<compile_context>
chip_gen: v7x
topology: tpu7x:2x2x1
jax: 0.10.0
libtpu: 0.0.40
codegen_flags: <defaults>
</compile_context>

<pallas_src>
import functools

import jax
import jax.numpy as jnp
import numpy as np
from jax.experimental import pallas as pl
from jax.experimental.pallas import tpu as pltpu


def _sine_layer_kernel(x_ref, w_ref, b_ref, o_ref, *, omega):
    # Fold omega into the small, VMEM-resident weight/bias tiles so the large
    # activation tile avoids an extra per-element multiply (sin already
    # saturates the VPU slots).
    w = w_ref[...] * omega                   # (in_f, out_f)
    b = b_ref[...] * omega                   # (1, out_f), broadcasts over rows
    acc = jnp.dot(x_ref[...], w, preferred_element_type=jnp.float32)
    o_ref[...] = jnp.sin(acc + b).astype(o_ref.dtype)


def _round_up(v, m):
    return (v + m - 1) // m * m


@functools.partial(jax.jit, static_argnames=("omega", "tile_m"))
def sine_layer(x, weight_t, bias, omega=30.0, tile_m=1024):
    """y = sin(omega * (x @ weight_t + bias)) — SIREN SineLayer forward.

    x:        (N, in_features)             float32
    weight_t: (in_features, out_features)  float32  (torch weight, transposed)
    bias:     (out_features,)              float32
    """
    n, in_f = x.shape
    out_f = weight_t.shape[1]

    # Row tile: multiple of 8 sublanes, no larger than the (padded) input.
    tile_m = max(8, min(int(tile_m), _round_up(n, 8)))
    tile_m = _round_up(tile_m, 8)
    n_pad = _round_up(n, tile_m)
    if n_pad != n:
        x = jnp.pad(x, ((0, n_pad - n), (0, 0)))

    bias2d = bias.reshape(1, out_f)
    grid = (n_pad // tile_m,)

    kernel = functools.partial(_sine_layer_kernel, omega=float(omega))

    y = pl.pallas_call(
        kernel,
        out_shape=jax.ShapeDtypeStruct((n_pad, out_f), x.dtype),
        grid=grid,
        in_specs=[
            # x: row tiles stream through VMEM (Pallas double-buffers the DMA).
            pl.BlockSpec((tile_m, in_f), lambda i: (i, 0)),
            # W, b: same block every grid step -> stay VMEM-resident.
            pl.BlockSpec((in_f, out_f), lambda i: (0, 0)),
            pl.BlockSpec((1, out_f), lambda i: (0, 0)),
        ],
        out_specs=pl.BlockSpec((tile_m, out_f), lambda i: (i, 0)),
        compiler_params=pltpu.CompilerParams(
            dimension_semantics=("parallel",),
        ),
    )(x, weight_t, bias2d)

    return y[:n] if n_pad != n else y


def paper_init(key, in_features, out_features, is_first=True, omega=30.0):
    """Deterministic re-implementation of paper_init_ + default bias init."""
    wk, bk = jax.random.split(key)
    if is_first:
        bound = 1.0 / in_features
    else:
        bound = float(np.sqrt(6.0 / in_features)) / omega
    # torch stores weight as (out_features, in_features); we keep the transpose.
    weight_t = jax.random.uniform(
        wk, (in_features, out_features), jnp.float32, minval=-bound, maxval=bound
    )
    # nn.Linear default bias init: uniform(-1/sqrt(in), 1/sqrt(in))
    b_bound = 1.0 / np.sqrt(in_features)
    bias = jax.random.uniform(
        bk, (out_features,), jnp.float32, minval=-b_bound, maxval=b_bound
    )
    return weight_t, bias


if __name__ == "__main__":
    key = jax.random.PRNGKey(0)
    kx, kp = jax.random.split(key)

    # Small demo shapes: ragged N (exercises row padding), lane-dense out=128.
    n_samples, in_features, out_features = 200, 32, 128
    omega = 30.0

    x = jax.random.normal(kx, (n_samples, in_features), jnp.float32)
    weight_t, bias = paper_init(kp, in_features, out_features,
                                is_first=True, omega=omega)

    # tile_m=128 so the demo actually runs a multi-step row grid.
    y = sine_layer(x, weight_t, bias, omega=omega, tile_m=128)
    jax.block_until_ready(y)

    # Reference in plain JAX (same math as torch.sin(omega * linear(x))).
    y_ref = jnp.sin(omega * (x @ weight_t + bias))
    np.testing.assert_allclose(np.asarray(y), np.asarray(y_ref),
                               rtol=1e-4, atol=1e-5)
    assert y.shape == (n_samples, out_features)

    print("KERNEL_OK")
</pallas_src>

<mosaic_0001>
module attributes {stable_mosaic.version = 11 : i64} {
  func.func @_sine_layer_kernel(%arg0: i32, %arg1: memref<128x32xf32, #tpu.memory_space<vmem>>, %arg2: memref<32x128xf32, #tpu.memory_space<vmem>>, %arg3: memref<1x128xf32, #tpu.memory_space<vmem>>, %arg4: memref<128x128xf32, #tpu.memory_space<vmem>>) attributes {dimension_semantics = [#tpu.dimension_semantics<parallel>], iteration_bounds = array<i64: 2>, scalar_prefetch = 0 : i64, scratch_operands = 0 : i64, tpu.core_type = #tpu.core_type<tc>, window_params = [{transform_indices = @transform_0, window_bounds = array<i64: 128, 32>}, {pipeline_mode = #tpu.pipeline_mode<synchronous>, transform_indices = @transform_1, window_bounds = array<i64: 32, 128>}, {pipeline_mode = #tpu.pipeline_mode<synchronous>, transform_indices = @transform_2, window_bounds = array<i64: 1, 128>}, {transform_indices = @transform_3, window_bounds = array<i64: 128, 128>}]} {
    %c0 = arith.constant 0 : index
    %c0_0 = arith.constant 0 : index
    %0 = vector.load %arg2[%c0, %c0_0] : memref<32x128xf32, #tpu.memory_space<vmem>>, vector<32x128xf32>
    %cst = arith.constant 3.000000e+01 : f32
    %1 = vector.broadcast %cst : f32 to vector<32x128xf32>
    %2 = arith.mulf %0, %1 : vector<32x128xf32>
    %c0_1 = arith.constant 0 : index
    %c0_2 = arith.constant 0 : index
    %3 = vector.load %arg3[%c0_1, %c0_2] : memref<1x128xf32, #tpu.memory_space<vmem>>, vector<1x128xf32>
    %cst_3 = arith.constant 3.000000e+01 : f32
    %4 = vector.broadcast %cst_3 : f32 to vector<1x128xf32>
    %5 = arith.mulf %3, %4 : vector<1x128xf32>
    %c0_4 = arith.constant 0 : index
    %c0_5 = arith.constant 0 : index
    %6 = vector.load %arg1[%c0_4, %c0_5] : memref<128x32xf32, #tpu.memory_space<vmem>>, vector<128x32xf32>
    %cst_6 = arith.constant dense<0.000000e+00> : vector<128x128xf32>
    %7 = tpu.matmul %6, %2, %cst_6 {dimension_numbers = #tpu.dot_dimension_numbers<[1], [0], [0], [1], [0, 0, 1, 1], [], []>} : vector<128x32xf32>, vector<32x128xf32>, vector<128x128xf32> -> vector<128x128xf32>
    %8 = vector.broadcast %5 : vector<1x128xf32> to vector<128x128xf32>
    %9 = arith.addf %7, %8 : vector<128x128xf32>
    %10 = math.sin %9 : vector<128x128xf32>
    %c0_7 = arith.constant 0 : index
    %c0_8 = arith.constant 0 : index
    %11 = vector.load %arg4[%c0_7, %c0_8] : memref<128x128xf32, #tpu.memory_space<vmem>>, vector<128x128xf32>
    tpu.vector_store %arg4[%c0_7, %c0_8], %10 {strides = array<i32>} : memref<128x128xf32, #tpu.memory_space<vmem>>, vector<128x128xf32>,
    return
  }
  func.func @transform_0(%arg0: i32) -> (i32, i32) {
    %c0_i32 = arith.constant 0 : i32
    %c0_i32_0 = arith.constant 0 : i32
    return %arg0, %c0_i32 : i32, i32
  }
  func.func @transform_1(%arg0: i32) -> (i32, i32) {
    %c0_i32 = arith.constant 0 : i32
    %c0_i32_0 = arith.constant 0 : i32
    %c0_i32_1 = arith.constant 0 : i32
    return %c0_i32, %c0_i32_0 : i32, i32
  }
  func.func @transform_2(%arg0: i32) -> (i32, i32) {
    %c0_i32 = arith.constant 0 : i32
    %c0_i32_0 = arith.constant 0 : i32
    %c0_i32_1 = arith.constant 0 : i32
    return %c0_i32, %c0_i32_0 : i32, i32
  }
  func.func @transform_3(%arg0: i32) -> (i32, i32) {
    %c0_i32 = arith.constant 0 : i32
    %c0_i32_0 = arith.constant 0 : i32
    return %arg0, %c0_i32 : i32, i32
  }
}

</mosaic_0001>

<llo_original>
// kernel: sine_layer.1
$region0: #{sine_layer.1}
  #allocation0 [shape = 'u32[]', space=smem, size = 0x4, offset = 0x4, fixed_abs, tag = 'smem constant byte address 0x4 - core index']
  #allocation1 [shape = 'u32[144,128]{1,0:T(1,128)}', space=vmem, size = 0x12000, scoped, tag = 'internal scratch']
  %s0 = inlined_call_operand.vmem [shape: f32[256,32], index: 0, kind: input, shape index: {}]
  %s1 = inlined_call_operand.vmem [shape: f32[32,128], index: 1, kind: input, shape index: {}]
  %s2 = inlined_call_operand.vmem [shape: f32[1,128], index: 2, kind: input, shape index: {}]
  %s3 = inlined_call_operand.vmem [shape: f32[256,128], index: 3, kind: output, shape index: {}]
  %s4 = sld [smem:[#allocation0]]
  $region45: #{sine_layer.1} parent=0
    _
  %s6 = ssub.s32 1, %s4
  %s7 = scalar_select 0, %s6, %s4
  loop: start=0, step=1, limit=4
  $region2: #{sine_layer.1} parent=0 // loop_pre_header
    _
  $region3: #{sine_layer.1} parent=0 // loop_header
    %s9 = sphi 0, %s13
    %p10 = scmp.ge.s32.totalorder %s9, 4
    %s19 = sphi 0, %s21
    %s22 = sphi 0, %s19
    %s23 = sphi 0, %s22
    %s39 = sphi 0, %s23
    %s43 = sphi 0, %s43
    %s45 = sphi 0, %s43
    %s46 = sphi 0, %s45
    %s60 = sphi 0, %s46
    %s64 = sphi 0, %s64
    %s66 = sphi 0, %s64
    %s67 = sphi 0, %s66
    %s81 = sphi 0, %s67
    %s87 = sphi 0, %s89
    %s90 = sphi 0, %s87
    %s91 = sphi 0, %s90
    %s107 = sphi 0, %s91
  $region4: #{sine_layer.1} parent=0 // loop_header_branch
    %12 = sbr.rel (%p10) target = $region8
  $region5: #{sine_layer.1} parent=0 // loop_body
    %s14 = ssub.s32 %s9, 1
    %s15 = ssub.s32 %s9, 2
    %s16 = sadd.s32 %s9, 1
    %s17 = ssub.s32 %s9, %s16
    %p18 = scmp.eq.s32.totalorder %s17, 0
    %s20 = sadd.s32 %s19, 1
    %s21 = scalar_select %p18, %s19, %s20
    %p24 = pneg %p18
    %p25 = scmp.eq.s32.totalorder %s9, 1
    %p26 = por %p24, %p25
    %p27 = scmp.ne.s32.totalorder %s19, %s22
    %p28 = scmp.eq.s32.totalorder %s9, 0
    %p29 = por %p27, %p28
    %p30 = scmp.ne.s32.totalorder %s19, %s22
    %p31 = scmp.eq.s32.totalorder %s14, 1
    %p32 = por %p30, %p31
    %p33 = scmp.ne.s32.totalorder %s22, %s23
    %p34 = scmp.eq.s32.totalorder %s14, 0
    %p35 = por %p33, %p34
    %p36 = scmp.ne.s32.totalorder %s22, %s23
    %p37 = scmp.eq.s32.totalorder %s15, 1
    %p38 = por %p36, %p37
    %p40 = scmp.ne.s32.totalorder %s23, %s39
    %p41 = scmp.eq.s32.totalorder %s15, 0
    %p42 = por %p40, %p41
    %s44 = sadd.s32 %s43, 1
    %p47 = scmp.eq.s32.totalorder %s9, 1
    %p48 = scmp.ne.s32.totalorder %s43, %s45
    %p49 = scmp.eq.s32.totalorder %s9, 0
    %p50 = por %p48, %p49
    %p51 = scmp.ne.s32.totalorder %s43, %s45
    %p52 = scmp.eq.s32.totalorder %s14, 1
    %p53 = por %p51, %p52
    %p54 = scmp.ne.s32.totalorder %s45, %s46
    %p55 = scmp.eq.s32.totalorder %s14, 0
    %p56 = por %p54, %p55
    %p57 = scmp.ne.s32.totalorder %s45, %s46
    %p58 = scmp.eq.s32.totalorder %s15, 1
    %p59 = por %p57, %p58
    %p61 = scmp.ne.s32.totalorder %s46, %s60
    %p62 = scmp.eq.s32.totalorder %s15, 0
    %p63 = por %p61, %p62
    %s65 = sadd.s32 %s64, 1
    %p68 = scmp.eq.s32.totalorder %s9, 1
    %p69 = scmp.ne.s32.totalorder %s64, %s66
    %p70 = scmp.eq.s32.totalorder %s9, 0
    %p71 = por %p69, %p70
    %p72 = scmp.ne.s32.totalorder %s64, %s66
    %p73 = scmp.eq.s32.totalorder %s14, 1
    %p74 = por %p72, %p73
    %p75 = scmp.ne.s32.totalorder %s66, %s67
    %p76 = scmp.eq.s32.totalorder %s14, 0
    %p77 = por %p75, %p76
    %p78 = scmp.ne.s32.totalorder %s66, %s67
    %p79 = scmp.eq.s32.totalorder %s15, 1
    %p80 = por %p78, %p79
    %p82 = scmp.ne.s32.totalorder %s67, %s81
    %p83 = scmp.eq.s32.totalorder %s15, 0
    %p84 = por %p82, %p83
    %s85 = ssub.s32 %s9, %s16
    %p86 = scmp.eq.s32.totalorder %s85, 0
    %s88 = sadd.s32 %s87, 1
    %s89 = scalar_select %p86, %s87, %s88
    %p92 = pneg %p86
    %p93 = scmp.eq.s32.totalorder %s9, 1
    %p94 = por %p92, %p93
    %p95 = scmp.ne.s32.totalorder %s87, %s90
    %p96 = scmp.eq.s32.totalorder %s9, 0
    %p97 = por %p95, %p96
    %p98 = scmp.ne.s32.totalorder %s87, %s90
    %p99 = scmp.eq.s32.totalorder %s14, 1
    %p100 = por %p98, %p99
    %p101 = scmp.ne.s32.totalorder %s90, %s91
    %p102 = scmp.eq.s32.totalorder %s14, 0
    %p103 = por %p101, %p102
    %p104 = scmp.ne.s32.totalorder %s90, %s91
    %p105 = scmp.eq.s32.totalorder %s15, 1
    %p106 = por %p104, %p105
    %p108 = scmp.ne.s32.totalorder %s91, %s107
    %p109 = scmp.eq.s32.totalorder %s15, 0
    %p110 = por %p108, %p109
    %p111 = scmp.le.s32.totalorder 1, %s9
    %p112 = scmp.lt.s32.totalorder %s9, 3
    %p113 = pnand %p111, %p112
    %p114 = pneg %p113
    // Predicated region
    $region9: #{sine_layer.1} parent=5 // pred_check
      _
    $region10: #{sine_layer.1} parent=5 // pred_check_branch
      %116 = sbr.rel (%p113) target = $region12
    $region11: #{sine_layer.1} parent=5 // pred_region
      %s117 = ssub.s32 %s9, 1
      // Predicated region
      $region13: #{sine_layer.1} parent=11 // pred_check
        %p118 = pneg %p56
      $region14: #{sine_layer.1} parent=11 // pred_check_branch
        %120 = sbr.rel (%p118) target = $region16
      $region15: #{sine_layer.1} parent=11 // pred_region
        _
      $region16: #{sine_layer.1} parent=11 // pred_fallthru
        _
      // Predicated region
      $region17: #{sine_layer.1} parent=11 // pred_check
        %p121 = pneg %p77
      $region18: #{sine_layer.1} parent=11 // pred_check_branch
        %123 = sbr.rel (%p121) target = $region20
      $region19: #{sine_layer.1} parent=11 // pred_region
        _
      $region20: #{sine_layer.1} parent=11 // pred_fallthru
        _
    $region12: #{sine_layer.1} parent=5 // pred_fallthru
      _
    %p124 = scmp.lt.s32.totalorder %s9, 2
    // Predicated region
    $region21: #{sine_layer.1} parent=5 // pred_check
      %p125 = pneg %p124
    $region22: #{sine_layer.1} parent=5 // pred_check_branch
      %127 = sbr.rel (%p125) target = $region24
    $region23: #{sine_layer.1} parent=5 // pred_region
      // Predicated region
      $region25: #{sine_layer.1} parent=23 // pred_check
        %p128 = pneg %p29
      $region26: #{sine_layer.1} parent=23 // pred_check_branch
        %130 = sbr.rel (%p128) target = $region28
      $region27: #{sine_layer.1} parent=23 // pred_region
        %s131 = smul.u32 16, %s9
        %p132 = scmp.lt.s32.totalorder %s131, 31
        %s133 = scalar_select %p132, %s131, 31
        %s134 = smul.addr %s133, 8
        %s135 = scalar_lea.vmem %s0, %s134
        %s136 = smul.u32 16, %s9
      $region28: #{sine_layer.1} parent=23 // pred_fallthru
        _
    $region24: #{sine_layer.1} parent=5 // pred_fallthru
      _
    %p137 = scmp.le.s32.totalorder 1, %s9
    %p138 = scmp.lt.s32.totalorder %s9, 3
    %p139 = pnand %p137, %p138
    %p140 = pneg %p139
    // Predicated region
    $region29: #{sine_layer.1} parent=5 // pred_check
      _
    $region30: #{sine_layer.1} parent=5 // pred_check_branch
      %142 = sbr.rel (%p139) target = $region32
    $region31: #{sine_layer.1} parent=5 // pred_region
      %s143 = ssub.s32 %s9, 1
      %s144 = smul.u32 16, %s14
      %p145 = scmp.lt.s32.totalorder %s144, 31
      %s146 = scalar_select %p145, %s144, 31
      %s147 = smul.addr %s146, 8
      %s148 = scalar_lea.vmem %s0, %s147
      %p149 = pneg %p35
      %p150 = pneg %p32
      %p151 = pneg %p56
      %p152 = pneg %p53
      %p153 = pneg %p77
      %p154 = pneg %p74
      %p155 = pneg %p103
      %p156 = pneg %p100
      %s157 = smul.u32 16, %s14
      %p158 = scmp.lt.s32.totalorder %s157, 31
      %s159 = scalar_select %p158, %s157, 31
      %s160 = smul.addr %s159, 8
      %s161 = scalar_lea.vmem %s3, %s160
      %s162 = smul.u32 16, %s14
      %p163 = scmp.lt.s32.totalorder %s162, 31
      %s164 = scalar_select %p163, %s162, 31
      %s165 = smul.addr %s164, 8
      %s166 = scalar_lea.vmem %s0, %s165
      %s167 = smul.u32 16, %s14
      %s168 = smul.u32 16, %s14
      %p169 = scmp.lt.s32.totalorder %s168, 31
      %s170 = scalar_select %p169, %s168, 31
      %s171 = smul.addr %s170, 8
      %s172 = scalar_lea.vmem %s3, %s171
      %s173 = smul.u32 16, %s14
      %v174 = vld [vmem:[%s1] sm:$0xff]
      %v175 = vld [vmem:[%s1 + $0x8] sm:$0xff]
      %v176 = vld [vmem:[%s1 + $0x10] sm:$0xff]
      %v177 = vld [vmem:[%s1 + $0x18] sm:$0xff]
      %v178 = vmul.f32 %v174, 30.0
      %v179 = vmul.f32 %v175, 30.0
      %v180 = vmul.f32 %v176, 30.0
      %v181 = vmul.f32 %v177, 30.0
      %v182 = vld [vmem:[%s2] sm:$0x1]
      %v183 = vmul.f32 %v182, 30.0
      %v184 = vld [vmem:[%s166] sm:$0xff]
      %v185 = vld [vmem:[%s166 + $0x8] sm:$0xff]
      %v186 = vld [vmem:[%s166 + $0x10] sm:$0xff]
      %v187 = vld [vmem:[%s166 + $0x18] sm:$0xff]
      %v188 = vld [vmem:[%s166 + $0x20] sm:$0xff]
      %v189 = vld [vmem:[%s166 + $0x28] sm:$0xff]
      %v190 = vld [vmem:[%s166 + $0x30] sm:$0xff]
      %v191 = vld [vmem:[%s166 + $0x38] sm:$0xff]
      %v192 = vld [vmem:[%s166 + $0x40] sm:$0xff]
      %v193 = vld [vmem:[%s166 + $0x48] sm:$0xff]
      %v194 = vld [vmem:[%s166 + $0x50] sm:$0xff]
      %v195 = vld [vmem:[%s166 + $0x58] sm:$0xff]
      %v196 = vld [vmem:[%s166 + $0x60] sm:$0xff]
      %v197 = vld [vmem:[%s166 + $0x68] sm:$0xff]
      %v198 = vld [vmem:[%s166 + $0x70] sm:$0xff]
      %v199 = vld [vmem:[%s166 + $0x78] sm:$0xff]
      %v201 = vlaneseq
      %v202 = vshrl.u32 %v201, 7
      %v203 = vsub.s32 0, %v202
      %v204 = vrot.slane %v183, %v203
      %vm206 = vcmask 261120
      %v208 = vsel %vm206, %v184, 0
      %v211 = vsel %vm206, %v185, 0
      %v214 = vsel %vm206, %v186, 0
      %v217 = vsel %vm206, %v187, 0
      %v220 = vsel %vm206, %v188, 0
      %v223 = vsel %vm206, %v189, 0
      %v226 = vsel %vm206, %v190, 0
      %v229 = vsel %vm206, %v191, 0
      %v232 = vsel %vm206, %v192, 0
      %v235 = vsel %vm206, %v193, 0
      %v238 = vsel %vm206, %v194, 0
      %v241 = vsel %vm206, %v195, 0
      %v244 = vsel %vm206, %v196, 0
      %v247 = vsel %vm206, %v197, 0
      %v250 = vsel %vm206, %v198, 0
      %v253 = vsel %vm206, %v199, 0
      %255 = vmatprep.subr.mxu0 0.0
      %256 = vmatpush1.msra.mxu0 %v178
      %257 = vmatprep.subr.mxu0 0.0
      %258 = vmatpush1.msra.mxu0 %v179
      %259 = vmatprep.subr.mxu0 0.0
      %260 = vmatpush1.msra.mxu0 %v180
      %261 = vmatprep.subr.mxu0 0.0
      %262 = vmatpush1.msra.mxu0 %v181
      %263 = vmatprep.subr.mxu0 0.0
      %264 = vmatpush1.msra.mxu0 0.0
      %265 = vmatprep.subr.mxu0 0.0
      %266 = vmatpush1.msra.mxu0 0.0
      %267 = vmatprep.subr.mxu0 0.0
      %268 = vmatpush1.msra.mxu0 0.0
      %269 = vmatprep.subr.mxu0 0.0
      %270 = vmatpush1.msra.mxu0 0.0
      %271 = vmatprep.subr.mxu0 0.0
      %272 = vmatpush1.msra.mxu0 0.0
      %273 = vmatprep.subr.mxu0 0.0
      %274 = vmatpush1.msra.mxu0 0.0
      %275 = vmatprep.subr.mxu0 0.0
      %276 = vmatpush1.msra.mxu0 0.0
      %277 = vmatprep.subr.mxu0 0.0
      %278 = vmatpush1.msra.mxu0 0.0
      %279 = vmatprep.subr.mxu0 0.0
      %280 = vmatpush1.msra.mxu0 0.0
      %281 = vmatprep.subr.mxu0 0.0
      %282 = vmatpush1.msra.mxu0 0.0
      %283 = vmatprep.subr.mxu0 0.0
      %284 = vmatpush1.msra.mxu0 0.0
      %285 = vmatprep.subr.mxu0 0.0
      %286 = vmatpush1.msra.mxu0 0.0
      %287 = vmatprep.subr.mxu0 0.0
      %288 = vmatpush1.msra.mxu0 0.0
      %289 = vmatprep.subr.mxu0 0.0
      %290 = vmatpush1.msra.mxu0 0.0
      %291 = vmatprep.subr.mxu0 0.0
      %292 = vmatpush1.msra.mxu0 0.0
      %293 = vmatprep.subr.mxu0 0.0
      %294 = vmatpush1.msra.mxu0 0.0
      %295 = vmatprep.subr.mxu0 0.0
      %296 = vmatpush1.msra.mxu0 0.0
      %297 = vmatprep.subr.mxu0 0.0
      %298 = vmatpush1.msra.mxu0 0.0
      %299 = vmatprep.subr.mxu0 0.0
      %300 = vmatpush1.msra.mxu0 0.0
      %301 = vmatprep.subr.mxu0 0.0
      %302 = vmatpush1.msra.mxu0 0.0
      %303 = vmatprep.subr.mxu0 0.0
      %304 = vmatpush1.msra.mxu0 0.0
      %305 = vmatprep.subr.mxu0 0.0
      %306 = vmatpush1.msra.mxu0 0.0
      %307 = vmatprep.subr.mxu0 0.0
      %308 = vmatpush1.msra.mxu0 0.0
      %309 = vmatprep.subr.mxu0 0.0
      %310 = vmatpush1.msra.mxu0 0.0
      %311 = vmatprep.subr.mxu0 0.0
      %312 = vmatpush1.msra.mxu0 0.0
      %313 = vmatprep.subr.mxu0 0.0
      %314 = vmatpush1.msra.mxu0 0.0
      %315 = vmatprep.subr.mxu0 0.0
      %316 = vmatpush1.msra.mxu0 0.0
      %317 = vmatprep.subr.mxu0 0.0
      %318 = vmatpush1.msra.mxu0 0.0
      %319 = vmatprep.mubr.f32.mxu0 0.0
      %320 = vmatmul.mubr.f32.gmra.mrb[0].mxu0 %v208
      %v321 = vpop.f32.mrb[0].mxu0
      %v322 = vadd.f32 %v204, %v321
      %v323 = vpop.f32.mrb[0].mxu0
      %324 = vmatprep.mubr.f32.mxu0 0.0
      %325 = vmatmul.mubr.f32.gmra.mrb[0].mxu0 %v211
      %v326 = vpop.f32.mrb[0].mxu0
      %v327 = vadd.f32 %v204, %v326
      %v328 = vpop.f32.mrb[0].mxu0
      %329 = vmatprep.mubr.f32.mxu0 0.0
      %330 = vmatmul.mubr.f32.gmra.mrb[0].mxu0 %v214
      %v331 = vpop.f32.mrb[0].mxu0
      %v332 = vadd.f32 %v204, %v331
      %v333 = vpop.f32.mrb[0].mxu0
      %334 = vmatprep.mubr.f32.mxu0 0.0
      %335 = vmatmul.mubr.f32.gmra.mrb[0].mxu0 %v217
      %v336 = vpop.f32.mrb[0].mxu0
      %v337 = vadd.f32 %v204, %v336
      %v338 = vpop.f32.mrb[0].mxu0
      %339 = vmatprep.mubr.f32.mxu0 0.0
      %340 = vmatmul.mubr.f32.gmra.mrb[0].mxu0 %v220
      %v341 = vpop.f32.mrb[0].mxu0
      %v342 = vadd.f32 %v204, %v341
      %v343 = vpop.f32.mrb[0].mxu0
      %344 = vmatprep.mubr.f32.mxu0 0.0
      %345 = vmatmul.mubr.f32.gmra.mrb[0].mxu0 %v223
      %v346 = vpop.f32.mrb[0].mxu0
      %v347 = vadd.f32 %v204, %v346
      %v348 = vpop.f32.mrb[0].mxu0
      %349 = vmatprep.mubr.f32.mxu0 0.0
      %350 = vmatmul.mubr.f32.gmra.mrb[0].mxu0 %v226
      %v351 = vpop.f32.mrb[0].mxu0
      %v352 = vadd.f32 %v204, %v351
      %v353 = vpop.f32.mrb[0].mxu0
      %354 = vmatprep.mubr.f32.mxu0 0.0
      %355 = vmatmul.mubr.f32.gmra.mrb[0].mxu0 %v229
      %v356 = vpop.f32.mrb[0].mxu0
      %v357 = vadd.f32 %v204, %v356
      %v358 = vpop.f32.mrb[0].mxu0
      %359 = vmatprep.mubr.f32.mxu0 0.0
      %360 = vmatmul.mubr.f32.gmra.mrb[0].mxu0 %v232
      %v361 = vpop.f32.mrb[0].mxu0
      %v362 = vadd.f32 %v204, %v361
      %v363 = vpop.f32.mrb[0].mxu0
      %364 = vmatprep.mubr.f32.mxu0 0.0
      %365 = vmatmul.mubr.f32.gmra.mrb[0].mxu0 %v235
      %v366 = vpop.f32.mrb[0].mxu0
      %v367 = vadd.f32 %v204, %v366
      %v368 = vpop.f32.mrb[0].mxu0
      %369 = vmatprep.mubr.f32.mxu0 0.0
      %370 = vmatmul.mubr.f32.gmra.mrb[0].mxu0 %v238
      %v371 = vpop.f32.mrb[0].mxu0
      %v372 = vadd.f32 %v204, %v371
      %v373 = vpop.f32.mrb[0].mxu0
      %374 = vmatprep.mubr.f32.mxu0 0.0
      %375 = vmatmul.mubr.f32.gmra.mrb[0].mxu0 %v241
      %v376 = vpop.f32.mrb[0].mxu0
      %v377 = vadd.f32 %v204, %v376
      %v378 = vpop.f32.mrb[0].mxu0
      %379 = vmatprep.mubr.f32.mxu0 0.0
      %380 = vmatmul.mubr.f32.gmra.mrb[0].mxu0 %v244
      %v381 = vpop.f32.mrb[0].mxu0
      %v382 = vadd.f32 %v204, %v381
      %v383 = vpop.f32.mrb[0].mxu0
      %384 = vmatprep.mubr.f32.mxu0 0.0
      %385 = vmatmul.mubr.f32.gmra.mrb[0].mxu0 %v247
      %v386 = vpop.f32.mrb[0].mxu0
      %v387 = vadd.f32 %v204, %v386
      %v388 = vpop.f32.mrb[0].mxu0
      %389 = vmatprep.mubr.f32.mxu0 0.0
      %390 = vmatmul.mubr.f32.gmra.mrb[0].mxu0 %v250
      %v391 = vpop.f32.mrb[0].mxu0
      %v392 = vadd.f32 %v204, %v391
      %v393 = vpop.f32.mrb[0].mxu0
      %394 = vmatprep.mubr.f32.mxu0 0.0
      %395 = vmatmul.mubr.f32.gmra.mrb[0].mxu0 %v253
      %v396 = vpop.f32.mrb[0].mxu0
      %v397 = vadd.f32 %v204, %v396
      %v398 = vpop.f32.mrb[0].mxu0
      %399 = vdwg.mxu0
      %v400 = vand.u32 2147483647, %v322
      %vm401 = vcmp.le.f32.partialorder %v400, 0.7853982
      %vm402 = vcmp.lt.s32.totalorder %v322, 0
      %v403 = vand.u32 %v322, 2139095040
      %v404 = vshrl.u32 %v403, 23
      %v405 = vsub.s32 %v404, 127
      %v406 = vand.u32 2147483647, %v322
      %v407 = vand.u32 %v406, 8388607
      %v408 = vor.u32 %v407, 8388608
      %v409 = vsub.s32 0, %v408
      %v410 = vadd.s32 %v405, 1
      %vm411 = vcmp.gt.s32.totalorder %v410, 0
      %v412 = vsel %vm411, %v410, 0
      %v413 = vshrl.u32 %v412, 5
      %v414 = vand.u32 %v412, 31
      %v415 = vsub.s32 32, %v414
      %v416 = vshrl.u32 683565275, %v415
      %v417 = vshll.u32 683565275, %v414
      %v418 = vshrl.u32 2475754826, %v415
      %v419 = vor.u32 %v417, %v418
      %v420 = vshll.u32 2475754826, %v414
      %v421 = vshrl.u32 2131351028, %v415
      %v422 = vor.u32 %v420, %v421
      %v423 = vshll.u32 2131351028, %v414
      %v424 = vshrl.u32 2102212464, %v415
      %v425 = vor.u32 %v423, %v424
      %v426 = vshll.u32 2102212464, %v414
      %v427 = vshrl.u32 920167782, %v415
      %v428 = vor.u32 %v426, %v427
      %v429 = vshll.u32 920167782, %v414
      %v430 = vshrl.u32 1326507024, %v415
      %v431 = vor.u32 %v429, %v430
      %vm432 = vcmp.lt.s32.totalorder %v413, 1
      %vm433 = vcmp.lt.s32.totalorder %v413, 2
      %vm434 = vcmp.lt.s32.totalorder %v413, 3
      %vm435 = vcmp.lt.s32.totalorder %v413, 4
      %v436 = vsel %vm432, %v416, %v419
      %v437 = vsel %vm435, %v425, 2102212464
      %v438 = vsel %vm434, %v422, %v437
      %v439 = vsel %vm433, %v436, %v438
      %v440 = vsel %vm432, %v419, %v422
      %v441 = vsel %vm435, %v428, 920167782
      %v442 = vsel %vm434, %v425, %v441
      %v443 = vsel %vm433, %v440, %v442
      %v444 = vsel %vm432, %v422, %v425
      %v445 = vsel %vm435, %v431, 1326507024
      %v446 = vsel %vm434, %v428, %v445
      %v447 = vsel %vm433, %v444, %v446
      %v448 = vshll.u32 %v408, 8
      %v449 = vmul.u32.u64.compose %v448, %v447
      %v450 = vextract.low.u32 %v449
      %v451 = vextract.high.u32 %v449
      %v452 = vmul.u32.u64.compose %v448, %v443
      %v453 = vextract.low.u32 %v452
      %v454 = vextract.high.u32 %v452
      %v455 = vmul.u32 %v448, %v439
      %v456 = vadd.s32 %v451, %v453
      %vm457 = vc.u32 %v451, %v453
      %v458 = vadd.s32 %v454, 1
      %v459 = vsel %vm457, %v458, %v454
      %v460 = vadd.s32 %v455, %v459
      %v461 = vadd.s32 %v460, 536870912
      %v462 = vshrl.u32 %v461, 30
      %v463 = vshll.u32 %v462, 30
      %v464 = vsub.s32 %v460, %v463
      %vm465 = vcmp.lt.s32.totalorder %v464, 0
      %v466 = vsub.s32 0, %v464
      %v467 = vsel %vm465, %v466, %v464
      %v468 = vclz %v467
      %v469 = vsub.s32 %v468, 2
      %vm470 = vcmp.gt.s32.totalorder 0, %v469
      %v471 = vsel %vm470, 0, %v469
      %v472 = vsub.s32 32, %v471
      %v473 = vshll.u32 %v464, %v471
      %v474 = vshrl.u32 %v456, %v472
      %v475 = vor.u32 %v473, %v474
      %v476 = vsub.s32 4294967266, %v471
      %v477 = vadd.s32 %v476, 127
      %v478 = vshll.u32 %v477, 23
      %v479 = vor.u32 4788187, %v478
      %v480 = vand.u32 2147483647, %v479
      %v482 = vcvt.s32.f32 %v475
      %v483 = vmul.f32 %v482, %v480
      %v484 = vxor.u32 %v483, 2147483648
      %v485 = vsel %vm402, %v484, %v483
      %v486 = vsub.s32 4, %v462
      %v487 = vsel %vm402, %v486, %v462
      %v488 = vsel %vm401, %v322, %v485
      %v489 = vsel %vm401, 0, %v487
      %v490 = vcosq.f32.pop %v488
      %v491 = vsinq.f32.pop %v488
      %vm492 = vweird.f32 %v322
      %v493 = vadd.s32 %v489, 3
      %v494 = vand.u32 %v493, 3
      %vm495 = vcmp.lt.s32.totalorder %v494, 2
      %vm496 = vcmp.eq.s32.totalorder %v494, 0
      %v497 = vxor.u32 %v491, 2147483648
      %v498 = vsel %vm496, %v490, %v497
      %vm499 = vcmp.eq.s32.totalorder %v494, 2
      %v500 = vxor.u32 %v490, 2147483648
      %v501 = vsel %vm499, %v500, %v491
      %v502 = vsel %vm495, %v498, %v501
      %v503 = vsel %vm492, nan, %v502
      %v504 = vand.u32 2147483647, %v327
      %vm505 = vcmp.le.f32.partialorder %v504, 0.7853982
      %vm506 = vcmp.lt.s32.totalorder %v327, 0
      %v507 = vand.u32 %v327, 2139095040
      %v508 = vshrl.u32 %v507, 23
      %v509 = vsub.s32 %v508, 127
      %v510 = vand.u32 2147483647, %v327
      %v511 = vand.u32 %v510, 8388607
      %v512 = vor.u32 %v511, 8388608
      %v513 = vsub.s32 0, %v512
      %v514 = vadd.s32 %v509, 1
      %vm515 = vcmp.gt.s32.totalorder %v514, 0
      %v516 = vsel %vm515, %v514, 0
      %v517 = vshrl.u32 %v516, 5
      %v518 = vand.u32 %v516, 31
      %v519 = vsub.s32 32, %v518
      %v520 = vshrl.u32 683565275, %v519
      %v521 = vshll.u32 683565275, %v518
      %v522 = vshrl.u32 2475754826, %v519
      %v523 = vor.u32 %v521, %v522
      %v524 = vshll.u32 2475754826, %v518
      %v525 = vshrl.u32 2131351028, %v519
      %v526 = vor.u32 %v524, %v525
      %v527 = vshll.u32 2131351028, %v518
      %v528 = vshrl.u32 2102212464, %v519
      %v529 = vor.u32 %v527, %v528
      %v530 = vshll.u32 2102212464, %v518
      %v531 = vshrl.u32 920167782, %v519
      %v532 = vor.u32 %v530, %v531
      %v533 = vshll.u32 920167782, %v518
      %v534 = vshrl.u32 1326507024, %v519
      %v535 = vor.u32 %v533, %v534
      %vm536 = vcmp.lt.s32.totalorder %v517, 1
      %vm537 = vcmp.lt.s32.totalorder %v517, 2
      %vm538 = vcmp.lt.s32.totalorder %v517, 3
      %vm539 = vcmp.lt.s32.totalorder %v517, 4
      %v540 = vsel %vm536, %v520, %v523
      %v541 = vsel %vm539, %v529, 2102212464
      %v542 = vsel %vm538, %v526, %v541
      %v543 = vsel %vm537, %v540, %v542
      %v544 = vsel %vm536, %v523, %v526
      %v545 = vsel %vm539, %v532, 920167782
      %v546 = vsel %vm538, %v529, %v545
      %v547 = vsel %vm537, %v544, %v546
      %v548 = vsel %vm536, %v526, %v529
      %v549 = vsel %vm539, %v535, 1326507024
      %v550 = vsel %vm538, %v532, %v549
      %v551 = vsel %vm537, %v548, %v550
      %v552 = vshll.u32 %v512, 8
      %v553 = vmul.u32.u64.compose %v552, %v551
      %v554 = vextract.low.u32 %v553
      %v555 = vextract.high.u32 %v553
      %v556 = vmul.u32.u64.compose %v552, %v547
      %v557 = vextract.low.u32 %v556
      %v558 = vextract.high.u32 %v556
      %v559 = vmul.u32 %v552, %v543
      %v560 = vadd.s32 %v555, %v557
      %vm561 = vc.u32 %v555, %v557
      %v562 = vadd.s32 %v558, 1
      %v563 = vsel %vm561, %v562, %v558
      %v564 = vadd.s32 %v559, %v563
      %v565 = vadd.s32 %v564, 536870912
      %v566 = vshrl.u32 %v565, 30
      %v567 = vshll.u32 %v566, 30
      %v568 = vsub.s32 %v564, %v567
      %vm569 = vcmp.lt.s32.totalorder %v568, 0
      %v570 = vsub.s32 0, %v568
      %v571 = vsel %vm569, %v570, %v568
      %v572 = vclz %v571
      %v573 = vsub.s32 %v572, 2
      %vm574 = vcmp.gt.s32.totalorder 0, %v573
      %v575 = vsel %vm574, 0, %v573
      %v576 = vsub.s32 32, %v575
      %v577 = vshll.u32 %v568, %v575
      %v578 = vshrl.u32 %v560, %v576
      %v579 = vor.u32 %v577, %v578
      %v580 = vsub.s32 4294967266, %v575
      %v581 = vadd.s32 %v580, 127
      %v582 = vshll.u32 %v581, 23
      %v583 = vor.u32 4788187, %v582
      %v584 = vand.u32 2147483647, %v583
      %v586 = vcvt.s32.f32 %v579
      %v587 = vmul.f32 %v586, %v584
      %v588 = vxor.u32 %v587, 2147483648
      %v589 = vsel %vm506, %v588, %v587
      %v590 = vsub.s32 4, %v566
      %v591 = vsel %vm506, %v590, %v566
      %v592 = vsel %vm505, %v327, %v589
      %v593 = vsel %vm505, 0, %v591
      %v594 = vcosq.f32.pop %v592
      %v595 = vsinq.f32.pop %v592
      %vm596 = vweird.f32 %v327
      %v597 = vadd.s32 %v593, 3
      %v598 = vand.u32 %v597, 3
      %vm599 = vcmp.lt.s32.totalorder %v598, 2
      %vm600 = vcmp.eq.s32.totalorder %v598, 0
      %v601 = vxor.u32 %v595, 2147483648
      %v602 = vsel %vm600, %v594, %v601
      %vm603 = vcmp.eq.s32.totalorder %v598, 2
      %v604 = vxor.u32 %v594, 2147483648
      %v605 = vsel %vm603, %v604, %v595
      %v606 = vsel %vm599, %v602, %v605
      %v607 = vsel %vm596, nan, %v606
      %v608 = vand.u32 2147483647, %v332
      %vm609 = vcmp.le.f32.partialorder %v608, 0.7853982
      %vm610 = vcmp.lt.s32.totalorder %v332, 0
      %v611 = vand.u32 %v332, 2139095040
      %v612 = vshrl.u32 %v611, 23
      %v613 = vsub.s32 %v612, 127
      %v614 = vand.u32 2147483647, %v332
      %v615 = vand.u32 %v614, 8388607
      %v616 = vor.u32 %v615, 8388608
      %v617 = vsub.s32 0, %v616
      %v618 = vadd.s32 %v613, 1
      %vm619 = vcmp.gt.s32.totalorder %v618, 0
      %v620 = vsel %vm619, %v618, 0
      %v621 = vshrl.u32 %v620, 5
      %v622 = vand.u32 %v620, 31
      %v623 = vsub.s32 32, %v622
      %v624 = vshrl.u32 683565275, %v623
      %v625 = vshll.u32 683565275, %v622
      %v626 = vshrl.u32 2475754826, %v623
      %v627 = vor.u32 %v625, %v626
      %v628 = vshll.u32 2475754826, %v622
      %v629 = vshrl.u32 2131351028, %v623
      %v630 = vor.u32 %v628, %v629
      %v631 = vshll.u32 2131351028, %v622
      %v632 = vshrl.u32 2102212464, %v623
      %v633 = vor.u32 %v631, %v632
      %v634 = vshll.u32 2102212464, %v622
      %v635 = vshrl.u32 920167782, %v623
      %v636 = vor.u32 %v634, %v635
      %v637 = vshll.u32 920167782, %v622
      %v638 = vshrl.u32 1326507024, %v623
      %v639 = vor.u32 %v637, %v638
      %vm640 = vcmp.lt.s32.totalorder %v621, 1
      %vm641 = vcmp.lt.s32.totalorder %v621, 2
      %vm642 = vcmp.lt.s32.totalorder %v621, 3
      %vm643 = vcmp.lt.s32.totalorder %v621, 4
      %v644 = vsel %vm640, %v624, %v627
      %v645 = vsel %vm643, %v633, 2102212464
      %v646 = vsel %vm642, %v630, %v645
      %v647 = vsel %vm641, %v644, %v646
      %v648 = vsel %vm640, %v627, %v630
      %v649 = vsel %vm643, %v636, 920167782
      %v650 = vsel %vm642, %v633, %v649
      %v651 = vsel %vm641, %v648, %v650
      %v652 = vsel %vm640, %v630, %v633
      %v653 = vsel %vm643, %v639, 1326507024
      %v654 = vsel %vm642, %v636, %v653
      %v655 = vsel %vm641, %v652, %v654
      %v656 = vshll.u32 %v616, 8
      %v657 = vmul.u32.u64.compose %v656, %v655
      %v658 = vextract.low.u32 %v657
      %v659 = vextract.high.u32 %v657
      %v660 = vmul.u32.u64.compose %v656, %v651
      %v661 = vextract.low.u32 %v660
      %v662 = vextract.high.u32 %v660
      %v663 = vmul.u32 %v656, %v647
      %v664 = vadd.s32 %v659, %v661
      %vm665 = vc.u32 %v659, %v661
      %v666 = vadd.s32 %v662, 1
      %v667 = vsel %vm665, %v666, %v662
      %v668 = vadd.s32 %v663, %v667
      %v669 = vadd.s32 %v668, 536870912
      %v670 = vshrl.u32 %v669, 30
      %v671 = vshll.u32 %v670, 30
      %v672 = vsub.s32 %v668, %v671
      %vm673 = vcmp.lt.s32.totalorder %v672, 0
      %v674 = vsub.s32 0, %v672
      %v675 = vsel %vm673, %v674, %v672
      %v676 = vclz %v675
      %v677 = vsub.s32 %v676, 2
      %vm678 = vcmp.gt.s32.totalorder 0, %v677
      %v679 = vsel %vm678, 0, %v677
      %v680 = vsub.s32 32, %v679
      %v681 = vshll.u32 %v672, %v679
      %v682 = vshrl.u32 %v664, %v680
      %v683 = vor.u32 %v681, %v682
      %v684 = vsub.s32 4294967266, %v679
      %v685 = vadd.s32 %v684, 127
      %v686 = vshll.u32 %v685, 23
      %v687 = vor.u32 4788187, %v686
      %v688 = vand.u32 2147483647, %v687
      %v690 = vcvt.s32.f32 %v683
      %v691 = vmul.f32 %v690, %v688
      %v692 = vxor.u32 %v691, 2147483648
      %v693 = vsel %vm610, %v692, %v691
      %v694 = vsub.s32 4, %v670
      %v695 = vsel %vm610, %v694, %v670
      %v696 = vsel %vm609, %v332, %v693
      %v697 = vsel %vm609, 0, %v695
      %v698 = vcosq.f32.pop %v696
      %v699 = vsinq.f32.pop %v696
      %vm700 = vweird.f32 %v332
      %v701 = vadd.s32 %v697, 3
      %v702 = vand.u32 %v701, 3
      %vm703 = vcmp.lt.s32.totalorder %v702, 2
      %vm704 = vcmp.eq.s32.totalorder %v702, 0
      %v705 = vxor.u32 %v699, 2147483648
      %v706 = vsel %vm704, %v698, %v705
      %vm707 = vcmp.eq.s32.totalorder %v702, 2
      %v708 = vxor.u32 %v698, 2147483648
      %v709 = vsel %vm707, %v708, %v699
      %v710 = vsel %vm703, %v706, %v709
      %v711 = vsel %vm700, nan, %v710
      %v712 = vand.u32 2147483647, %v337
      %vm713 = vcmp.le.f32.partialorder %v712, 0.7853982
      %vm714 = vcmp.lt.s32.totalorder %v337, 0
      %v715 = vand.u32 %v337, 2139095040
      %v716 = vshrl.u32 %v715, 23
      %v717 = vsub.s32 %v716, 127
      %v718 = vand.u32 2147483647, %v337
      %v719 = vand.u32 %v718, 8388607
      %v720 = vor.u32 %v719, 8388608
      %v721 = vsub.s32 0, %v720
      %v722 = vadd.s32 %v717, 1
      %vm723 = vcmp.gt.s32.totalorder %v722, 0
      %v724 = vsel %vm723, %v722, 0
      %v725 = vshrl.u32 %v724, 5
      %v726 = vand.u32 %v724, 31
      %v727 = vsub.s32 32, %v726
      %v728 = vshrl.u32 683565275, %v727
      %v729 = vshll.u32 683565275, %v726
      %v730 = vshrl.u32 2475754826, %v727
      %v731 = vor.u32 %v729, %v730
      %v732 = vshll.u32 2475754826, %v726
      %v733 = vshrl.u32 2131351028, %v727
      %v734 = vor.u32 %v732, %v733
      %v735 = vshll.u32 2131351028, %v726
      %v736 = vshrl.u32 2102212464, %v727
      %v737 = vor.u32 %v735, %v736
      %v738 = vshll.u32 2102212464, %v726
      %v739 = vshrl.u32 920167782, %v727
      %v740 = vor.u32 %v738, %v739
      %v741 = vshll.u32 920167782, %v726
      %v742 = vshrl.u32 1326507024, %v727
      %v743 = vor.u32 %v741, %v742
      %vm744 = vcmp.lt.s32.totalorder %v725, 1
      %vm745 = vcmp.lt.s32.totalorder %v725, 2
      %vm746 = vcmp.lt.s32.totalorder %v725, 3
      %vm747 = vcmp.lt.s32.totalorder %v725, 4
      %v748 = vsel %vm744, %v728, %v731
      %v749 = vsel %vm747, %v737, 2102212464
      %v750 = vsel %vm746, %v734, %v749
      %v751 = vsel %vm745, %v748, %v750
      %v752 = vsel %vm744, %v731, %v734
      %v753 = vsel %vm747, %v740, 920167782
      %v754 = vsel %vm746, %v737, %v753
      %v755 = vsel %vm745, %v752, %v754
      %v756 = vsel %vm744, %v734, %v737
      %v757 = vsel %vm747, %v743, 1326507024
      %v758 = vsel %vm746, %v740, %v757
      %v759 = vsel %vm745, %v756, %v758
      %v760 = vshll.u32 %v720, 8
      %v761 = vmul.u32.u64.compose %v760, %v759
      %v762 = vextract.low.u32 %v761
      %v763 = vextract.high.u32 %v761
      %v764 = vmul.u32.u64.compose %v760, %v755
      %v765 = vextract.low.u32 %v764
      %v766 = vextract.high.u32 %v764
      %v767 = vmul.u32 %v760, %v751
      %v768 = vadd.s32 %v763, %v765
      %vm769 = vc.u32 %v763, %v765
      %v770 = vadd.s32 %v766, 1
      %v771 = vsel %vm769, %v770, %v766
      %v772 = vadd.s32 %v767, %v771
      %v773 = vadd.s32 %v772, 536870912
      %v774 = vshrl.u32 %v773, 30
      %v775 = vshll.u32 %v774, 30
      %v776 = vsub.s32 %v772, %v775
      %vm777 = vcmp.lt.s32.totalorder %v776, 0
      %v778 = vsub.s32 0, %v776
      %v779 = vsel %vm777, %v778, %v776
      %v780 = vclz %v779
      %v781 = vsub.s32 %v780, 2
      %vm782 = vcmp.gt.s32.totalorder 0, %v781
      %v783 = vsel %vm782, 0, %v781
      %v784 = vsub.s32 32, %v783
      %v785 = vshll.u32 %v776, %v783
      %v786 = vshrl.u32 %v768, %v784
      %v787 = vor.u32 %v785, %v786
      %v788 = vsub.s32 4294967266, %v783
      %v789 = vadd.s32 %v788, 127
      %v790 = vshll.u32 %v789, 23
      %v791 = vor.u32 4788187, %v790
      %v792 = vand.u32 2147483647, %v791
      %v794 = vcvt.s32.f32 %v787
      %v795 = vmul.f32 %v794, %v792
      %v796 = vxor.u32 %v795, 2147483648
      %v797 = vsel %vm714, %v796, %v795
      %v798 = vsub.s32 4, %v774
      %v799 = vsel %vm714, %v798, %v774
      %v800 = vsel %vm713, %v337, %v797
      %v801 = vsel %vm713, 0, %v799
      %v802 = vcosq.f32.pop %v800
      %v803 = vsinq.f32.pop %v800
      %vm804 = vweird.f32 %v337
      %v805 = vadd.s32 %v801, 3
      %v806 = vand.u32 %v805, 3
      %vm807 = vcmp.lt.s32.totalorder %v806, 2
      %vm808 = vcmp.eq.s32.totalorder %v806, 0
      %v809 = vxor.u32 %v803, 2147483648
      %v810 = vsel %vm808, %v802, %v809
      %vm811 = vcmp.eq.s32.totalorder %v806, 2
      %v812 = vxor.u32 %v802, 2147483648
      %v813 = vsel %vm811, %v812, %v803
      %v814 = vsel %vm807, %v810, %v813
      %v815 = vsel %vm804, nan, %v814
      %v816 = vand.u32 2147483647, %v342
      %vm817 = vcmp.le.f32.partialorder %v816, 0.7853982
      %vm818 = vcmp.lt.s32.totalorder %v342, 0
      %v819 = vand.u32 %v342, 2139095040
      %v820 = vshrl.u32 %v819, 23
      %v821 = vsub.s32 %v820, 127
      %v822 = vand.u32 2147483647, %v342
      %v823 = vand.u32 %v822, 8388607
      %v824 = vor.u32 %v823, 8388608
      %v825 = vsub.s32 0, %v824
      %v826 = vadd.s32 %v821, 1
      %vm827 = vcmp.gt.s32.totalorder %v826, 0
      %v828 = vsel %vm827, %v826, 0
      %v829 = vshrl.u32 %v828, 5
      %v830 = vand.u32 %v828, 31
      %v831 = vsub.s32 32, %v830
      %v832 = vshrl.u32 683565275, %v831
      %v833 = vshll.u32 683565275, %v830
      %v834 = vshrl.u32 2475754826, %v831
      %v835 = vor.u32 %v833, %v834
      %v836 = vshll.u32 2475754826, %v830
      %v837 = vshrl.u32 2131351028, %v831
      %v838 = vor.u32 %v836, %v837
      %v839 = vshll.u32 2131351028, %v830
      %v840 = vshrl.u32 2102212464, %v831
      %v841 = vor.u32 %v839, %v840
      %v842 = vshll.u32 2102212464, %v830
      %v843 = vshrl.u32 920167782, %v831
      %v844 = vor.u32 %v842, %v843
      %v845 = vshll.u32 920167782, %v830
      %v846 = vshrl.u32 1326507024, %v831
      %v847 = vor.u32 %v845, %v846
      %vm848 = vcmp.lt.s32.totalorder %v829, 1
      %vm849 = vcmp.lt.s32.totalorder %v829, 2
      %vm850 = vcmp.lt.s32.totalorder %v829, 3
      %vm851 = vcmp.lt.s32.totalorder %v829, 4
      %v852 = vsel %vm848, %v832, %v835
      %v853 = vsel %vm851, %v841, 2102212464
      %v854 = vsel %vm850, %v838, %v853
      %v855 = vsel %vm849, %v852, %v854
      %v856 = vsel %vm848, %v835, %v838
      %v857 = vsel %vm851, %v844, 920167782
      %v858 = vsel %vm850, %v841, %v857
      %v859 = vsel %vm849, %v856, %v858
      %v860 = vsel %vm848, %v838, %v841
      %v861 = vsel %vm851, %v847, 1326507024
      %v862 = vsel %vm850, %v844, %v861
      %v863 = vsel %vm849, %v860, %v862
      %v864 = vshll.u32 %v824, 8
      %v865 = vmul.u32.u64.compose %v864, %v863
      %v866 = vextract.low.u32 %v865
      %v867 = vextract.high.u32 %v865
      %v868 = vmul.u32.u64.compose %v864, %v859
      %v869 = vextract.low.u32 %v868
      %v870 = vextract.high.u32 %v868
      %v871 = vmul.u32 %v864, %v855
      %v872 = vadd.s32 %v867, %v869
      %vm873 = vc.u32 %v867, %v869
      %v874 = vadd.s32 %v870, 1
      %v875 = vsel %vm873, %v874, %v870
      %v876 = vadd.s32 %v871, %v875
      %v877 = vadd.s32 %v876, 536870912
      %v878 = vshrl.u32 %v877, 30
      %v879 = vshll.u32 %v878, 30
      %v880 = vsub.s32 %v876, %v879
      %vm881 = vcmp.lt.s32.totalorder %v880, 0
      %v882 = vsub.s32 0, %v880
      %v883 = vsel %vm881, %v882, %v880
      %v884 = vclz %v883
      %v885 = vsub.s32 %v884, 2
      %vm886 = vcmp.gt.s32.totalorder 0, %v885
      %v887 = vsel %vm886, 0, %v885
      %v888 = vsub.s32 32, %v887
      %v889 = vshll.u32 %v880, %v887
      %v890 = vshrl.u32 %v872, %v888
      %v891 = vor.u32 %v889, %v890
      %v892 = vsub.s32 4294967266, %v887
      %v893 = vadd.s32 %v892, 127
      %v894 = vshll.u32 %v893, 23
      %v895 = vor.u32 4788187, %v894
      %v896 = vand.u32 2147483647, %v895
      %v898 = vcvt.s32.f32 %v891
      %v899 = vmul.f32 %v898, %v896
      %v900 = vxor.u32 %v899, 2147483648
      %v901 = vsel %vm818, %v900, %v899
      %v902 = vsub.s32 4, %v878
      %v903 = vsel %vm818, %v902, %v878
      %v904 = vsel %vm817, %v342, %v901
      %v905 = vsel %vm817, 0, %v903
      %v906 = vcosq.f32.pop %v904
      %v907 = vsinq.f32.pop %v904
      %vm908 = vweird.f32 %v342
      %v909 = vadd.s32 %v905, 3
      %v910 = vand.u32 %v909, 3
      %vm911 = vcmp.lt.s32.totalorder %v910, 2
      %vm912 = vcmp.eq.s32.totalorder %v910, 0
      %v913 = vxor.u32 %v907, 2147483648
      %v914 = vsel %vm912, %v906, %v913
      %vm915 = vcmp.eq.s32.totalorder %v910, 2
      %v916 = vxor.u32 %v906, 2147483648
      %v917 = vsel %vm915, %v916, %v907
      %v918 = vsel %vm911, %v914, %v917
      %v919 = vsel %vm908, nan, %v918
      %v920 = vand.u32 2147483647, %v347
      %vm921 = vcmp.le.f32.partialorder %v920, 0.7853982
      %vm922 = vcmp.lt.s32.totalorder %v347, 0
      %v923 = vand.u32 %v347, 2139095040
      %v924 = vshrl.u32 %v923, 23
      %v925 = vsub.s32 %v924, 127
      %v926 = vand.u32 2147483647, %v347
      %v927 = vand.u32 %v926, 8388607
      %v928 = vor.u32 %v927, 8388608
      %v929 = vsub.s32 0, %v928
      %v930 = vadd.s32 %v925, 1
      %vm931 = vcmp.gt.s32.totalorder %v930, 0
      %v932 = vsel %vm931, %v930, 0
      %v933 = vshrl.u32 %v932, 5
      %v934 = vand.u32 %v932, 31
      %v935 = vsub.s32 32, %v934
      %v936 = vshrl.u32 683565275, %v935
      %v937 = vshll.u32 683565275, %v934
      %v938 = vshrl.u32 2475754826, %v935
      %v939 = vor.u32 %v937, %v938
      %v940 = vshll.u32 2475754826, %v934
      %v941 = vshrl.u32 2131351028, %v935
      %v942 = vor.u32 %v940, %v941
      %v943 = vshll.u32 2131351028, %v934
      %v944 = vshrl.u32 2102212464, %v935
      %v945 = vor.u32 %v943, %v944
      %v946 = vshll.u32 2102212464, %v934
      %v947 = vshrl.u32 920167782, %v935
      %v948 = vor.u32 %v946, %v947
      %v949 = vshll.u32 920167782, %v934
      %v950 = vshrl.u32 1326507024, %v935
      %v951 = vor.u32 %v949, %v950
      %vm952 = vcmp.lt.s32.totalorder %v933, 1
      %vm953 = vcmp.lt.s32.totalorder %v933, 2
      %vm954 = vcmp.lt.s32.totalorder %v933, 3
      %vm955 = vcmp.lt.s32.totalorder %v933, 4
      %v956 = vsel %vm952, %v936, %v939
      %v957 = vsel %vm955, %v945, 2102212464
      %v958 = vsel %vm954, %v942, %v957
      %v959 = vsel %vm953, %v956, %v958
      %v960 = vsel %vm952, %v939, %v942
      %v961 = vsel %vm955, %v948, 920167782
      %v962 = vsel %vm954, %v945, %v961
      %v963 = vsel %vm953, %v960, %v962
      %v964 = vsel %vm952, %v942, %v945
      %v965 = vsel %vm955, %v951, 1326507024
      %v966 = vsel %vm954, %v948, %v965
      %v967 = vsel %vm953, %v964, %v966
      %v968 = vshll.u32 %v928, 8
      %v969 = vmul.u32.u64.compose %v968, %v967
      %v970 = vextract.low.u32 %v969
      %v971 = vextract.high.u32 %v969
      %v972 = vmul.u32.u64.compose %v968, %v963
      %v973 = vextract.low.u32 %v972
      %v974 = vextract.high.u32 %v972
      %v975 = vmul.u32 %v968, %v959
      %v976 = vadd.s32 %v971, %v973
      %vm977 = vc.u32 %v971, %v973
      %v978 = vadd.s32 %v974, 1
      %v979 = vsel %vm977, %v978, %v974
      %v980 = vadd.s32 %v975, %v979
      %v981 = vadd.s32 %v980, 536870912
      %v982 = vshrl.u32 %v981, 30
      %v983 = vshll.u32 %v982, 30
      %v984 = vsub.s32 %v980, %v983
      %vm985 = vcmp.lt.s32.totalorder %v984, 0
      %v986 = vsub.s32 0, %v984
      %v987 = vsel %vm985, %v986, %v984
      %v988 = vclz %v987
      %v989 = vsub.s32 %v988, 2
      %vm990 = vcmp.gt.s32.totalorder 0, %v989
      %v991 = vsel %vm990, 0, %v989
      %v992 = vsub.s32 32, %v991
      %v993 = vshll.u32 %v984, %v991
      %v994 = vshrl.u32 %v976, %v992
      %v995 = vor.u32 %v993, %v994
      %v996 = vsub.s32 4294967266, %v991
      %v997 = vadd.s32 %v996, 127
      %v998 = vshll.u32 %v997, 23
      %v999 = vor.u32 4788187, %v998
      %v1000 = vand.u32 2147483647, %v999
      %v1002 = vcvt.s32.f32 %v995
      %v1003 = vmul.f32 %v1002, %v1000
      %v1004 = vxor.u32 %v1003, 2147483648
      %v1005 = vsel %vm922, %v1004, %v1003
      %v1006 = vsub.s32 4, %v982
      %v1007 = vsel %vm922, %v1006, %v982
      %v1008 = vsel %vm921, %v347, %v1005
      %v1009 = vsel %vm921, 0, %v1007
      %v1010 = vcosq.f32.pop %v1008
      %v1011 = vsinq.f32.pop %v1008
      %vm1012 = vweird.f32 %v347
      %v1013 = vadd.s32 %v1009, 3
      %v1014 = vand.u32 %v1013, 3
      %vm1015 = vcmp.lt.s32.totalorder %v1014, 2
      %vm1016 = vcmp.eq.s32.totalorder %v1014, 0
      %v1017 = vxor.u32 %v1011, 2147483648
      %v1018 = vsel %vm1016, %v1010, %v1017
      %vm1019 = vcmp.eq.s32.totalorder %v1014, 2
      %v1020 = vxor.u32 %v1010, 2147483648
      %v1021 = vsel %vm1019, %v1020, %v1011
      %v1022 = vsel %vm1015, %v1018, %v1021
      %v1023 = vsel %vm1012, nan, %v1022
      %v1024 = vand.u32 2147483647, %v352
      %vm1025 = vcmp.le.f32.partialorder %v1024, 0.7853982
      %vm1026 = vcmp.lt.s32.totalorder %v352, 0
      %v1027 = vand.u32 %v352, 2139095040
      %v1028 = vshrl.u32 %v1027, 23
      %v1029 = vsub.s32 %v1028, 127
      %v1030 = vand.u32 2147483647, %v352
      %v1031 = vand.u32 %v1030, 8388607
      %v1032 = vor.u32 %v1031, 8388608
      %v1033 = vsub.s32 0, %v1032
      %v1034 = vadd.s32 %v1029, 1
      %vm1035 = vcmp.gt.s32.totalorder %v1034, 0
      %v1036 = vsel %vm1035, %v1034, 0
      %v1037 = vshrl.u32 %v1036, 5
      %v1038 = vand.u32 %v1036, 31
      %v1039 = vsub.s32 32, %v1038
      %v1040 = vshrl.u32 683565275, %v1039
      %v1041 = vshll.u32 683565275, %v1038
      %v1042 = vshrl.u32 2475754826, %v1039
      %v1043 = vor.u32 %v1041, %v1042
      %v1044 = vshll.u32 2475754826, %v1038
      %v1045 = vshrl.u32 2131351028, %v1039
      %v1046 = vor.u32 %v1044, %v1045
      %v1047 = vshll.u32 2131351028, %v1038
      %v1048 = vshrl.u32 2102212464, %v1039
      %v1049 = vor.u32 %v1047, %v1048
      %v1050 = vshll.u32 2102212464, %v1038
      %v1051 = vshrl.u32 920167782, %v1039
      %v1052 = vor.u32 %v1050, %v1051
      %v1053 = vshll.u32 920167782, %v1038
      %v1054 = vshrl.u32 1326507024, %v1039
      %v1055 = vor.u32 %v1053, %v1054
      %vm1056 = vcmp.lt.s32.totalorder %v1037, 1
      %vm1057 = vcmp.lt.s32.totalorder %v1037, 2
      %vm1058 = vcmp.lt.s32.totalorder %v1037, 3
      %vm1059 = vcmp.lt.s32.totalorder %v1037, 4
      %v1060 = vsel %vm1056, %v1040, %v1043
      %v1061 = vsel %vm1059, %v1049, 2102212464
      %v1062 = vsel %vm1058, %v1046, %v1061
      %v1063 = vsel %vm1057, %v1060, %v1062
      %v1064 = vsel %vm1056, %v1043, %v1046
      %v1065 = vsel %vm1059, %v1052, 920167782
      %v1066 = vsel %vm1058, %v1049, %v1065
      %v1067 = vsel %vm1057, %v1064, %v1066
      %v1068 = vsel %vm1056, %v1046, %v1049
      %v1069 = vsel %vm1059, %v1055, 1326507024
      %v1070 = vsel %vm1058, %v1052, %v1069
      %v1071 = vsel %vm1057, %v1068, %v1070
      %v1072 = vshll.u32 %v1032, 8
      %v1073 = vmul.u32.u64.compose %v1072, %v1071
      %v1074 = vextract.low.u32 %v1073
      %v1075 = vextract.high.u32 %v1073
      %v1076 = vmul.u32.u64.compose %v1072, %v1067
      %v1077 = vextract.low.u32 %v1076
      %v1078 = vextract.high.u32 %v1076
      %v1079 = vmul.u32 %v1072, %v1063
      %v1080 = vadd.s32 %v1075, %v1077
      %vm1081 = vc.u32 %v1075, %v1077
      %v1082 = vadd.s32 %v1078, 1
      %v1083 = vsel %vm1081, %v1082, %v1078
      %v1084 = vadd.s32 %v1079, %v1083
      %v1085 = vadd.s32 %v1084, 536870912
      %v1086 = vshrl.u32 %v1085, 30
      %v1087 = vshll.u32 %v1086, 30
      %v1088 = vsub.s32 %v1084, %v1087
      %vm1089 = vcmp.lt.s32.totalorder %v1088, 0
      %v1090 = vsub.s32 0, %v1088
      %v1091 = vsel %vm1089, %v1090, %v1088
      %v1092 = vclz %v1091
      %v1093 = vsub.s32 %v1092, 2
      %vm1094 = vcmp.gt.s32.totalorder 0, %v1093
      %v1095 = vsel %vm1094, 0, %v1093
      %v1096 = vsub.s32 32, %v1095
      %v1097 = vshll.u32 %v1088, %v1095
      %v1098 = vshrl.u32 %v1080, %v1096
      %v1099 = vor.u32 %v1097, %v1098
      %v1100 = vsub.s32 4294967266, %v1095
      %v1101 = vadd.s32 %v1100, 127
      %v1102 = vshll.u32 %v1101, 23
      %v1103 = vor.u32 4788187, %v1102
      %v1104 = vand.u32 2147483647, %v1103
      %v1106 = vcvt.s32.f32 %v1099
      %v1107 = vmul.f32 %v1106, %v1104
      %v1108 = vxor.u32 %v1107, 2147483648
      %v1109 = vsel %vm1026, %v1108, %v1107
      %v1110 = vsub.s32 4, %v1086
      %v1111 = vsel %vm1026, %v1110, %v1086
      %v1112 = vsel %vm1025, %v352, %v1109
      %v1113 = vsel %vm1025, 0, %v1111
      %v1114 = vcosq.f32.pop %v1112
      %v1115 = vsinq.f32.pop %v1112
      %vm1116 = vweird.f32 %v352
      %v1117 = vadd.s32 %v1113, 3
      %v1118 = vand.u32 %v1117, 3
      %vm1119 = vcmp.lt.s32.totalorder %v1118, 2
      %vm1120 = vcmp.eq.s32.totalorder %v1118, 0
      %v1121 = vxor.u32 %v1115, 2147483648
      %v1122 = vsel %vm1120, %v1114, %v1121
      %vm1123 = vcmp.eq.s32.totalorder %v1118, 2
      %v1124 = vxor.u32 %v1114, 2147483648
      %v1125 = vsel %vm1123, %v1124, %v1115
      %v1126 = vsel %vm1119, %v1122, %v1125
      %v1127 = vsel %vm1116, nan, %v1126
      %v1128 = vand.u32 2147483647, %v357
      %vm1129 = vcmp.le.f32.partialorder %v1128, 0.7853982
      %vm1130 = vcmp.lt.s32.totalorder %v357, 0
      %v1131 = vand.u32 %v357, 2139095040
      %v1132 = vshrl.u32 %v1131, 23
      %v1133 = vsub.s32 %v1132, 127
      %v1134 = vand.u32 2147483647, %v357
      %v1135 = vand.u32 %v1134, 8388607
      %v1136 = vor.u32 %v1135, 8388608
      %v1137 = vsub.s32 0, %v1136
      %v1138 = vadd.s32 %v1133, 1
      %vm1139 = vcmp.gt.s32.totalorder %v1138, 0
      %v1140 = vsel %vm1139, %v1138, 0
      %v1141 = vshrl.u32 %v1140, 5
      %v1142 = vand.u32 %v1140, 31
      %v1143 = vsub.s32 32, %v1142
      %v1144 = vshrl.u32 683565275, %v1143
      %v1145 = vshll.u32 683565275, %v1142
      %v1146 = vshrl.u32 2475754826, %v1143
      %v1147 = vor.u32 %v1145, %v1146
      %v1148 = vshll.u32 2475754826, %v1142
      %v1149 = vshrl.u32 2131351028, %v1143
      %v1150 = vor.u32 %v1148, %v1149
      %v1151 = vshll.u32 2131351028, %v1142
      %v1152 = vshrl.u32 2102212464, %v1143
      %v1153 = vor.u32 %v1151, %v1152
      %v1154 = vshll.u32 2102212464, %v1142
      %v1155 = vshrl.u32 920167782, %v1143
      %v1156 = vor.u32 %v1154, %v1155
      %v1157 = vshll.u32 920167782, %v1142
      %v1158 = vshrl.u32 1326507024, %v1143
      %v1159 = vor.u32 %v1157, %v1158
      %vm1160 = vcmp.lt.s32.totalorder %v1141, 1
      %vm1161 = vcmp.lt.s32.totalorder %v1141, 2
      %vm1162 = vcmp.lt.s32.totalorder %v1141, 3
      %vm1163 = vcmp.lt.s32.totalorder %v1141, 4
      %v1164 = vsel %vm1160, %v1144, %v1147
      %v1165 = vsel %vm1163, %v1153, 2102212464
      %v1166 = vsel %vm1162, %v1150, %v1165
      %v1167 = vsel %vm1161, %v1164, %v1166
      %v1168 = vsel %vm1160, %v1147, %v1150
      %v1169 = vsel %vm1163, %v1156, 920167782
      %v1170 = vsel %vm1162, %v1153, %v1169
      %v1171 = vsel %vm1161, %v1168, %v1170
      %v1172 = vsel %vm1160, %v1150, %v1153
      %v1173 = vsel %vm1163, %v1159, 1326507024
      %v1174 = vsel %vm1162, %v1156, %v1173
      %v1175 = vsel %vm1161, %v1172, %v1174
      %v1176 = vshll.u32 %v1136, 8
      %v1177 = vmul.u32.u64.compose %v1176, %v1175
      %v1178 = vextract.low.u32 %v1177
      %v1179 = vextract.high.u32 %v1177
      %v1180 = vmul.u32.u64.compose %v1176, %v1171
      %v1181 = vextract.low.u32 %v1180
      %v1182 = vextract.high.u32 %v1180
      %v1183 = vmul.u32 %v1176, %v1167
      %v1184 = vadd.s32 %v1179, %v1181
      %vm1185 = vc.u32 %v1179, %v1181
      %v1186 = vadd.s32 %v1182, 1
      %v1187 = vsel %vm1185, %v1186, %v1182
      %v1188 = vadd.s32 %v1183, %v1187
      %v1189 = vadd.s32 %v1188, 536870912
      %v1190 = vshrl.u32 %v1189, 30
      %v1191 = vshll.u32 %v1190, 30
      %v1192 = vsub.s32 %v1188, %v1191
      %vm1193 = vcmp.lt.s32.totalorder %v1192, 0
      %v1194 = vsub.s32 0, %v1192
      %v1195 = vsel %vm1193, %v1194, %v1192
      %v1196 = vclz %v1195
      %v1197 = vsub.s32 %v1196, 2
      %vm1198 = vcmp.gt.s32.totalorder 0, %v1197
      %v1199 = vsel %vm1198, 0, %v1197
      %v1200 = vsub.s32 32, %v1199
      %v1201 = vshll.u32 %v1192, %v1199
      %v1202 = vshrl.u32 %v1184, %v1200
      %v1203 = vor.u32 %v1201, %v1202
      %v1204 = vsub.s32 4294967266, %v1199
      %v1205 = vadd.s32 %v1204, 127
      %v1206 = vshll.u32 %v1205, 23
      %v1207 = vor.u32 4788187, %v1206
      %v1208 = vand.u32 2147483647, %v1207
      %v1210 = vcvt.s32.f32 %v1203
      %v1211 = vmul.f32 %v1210, %v1208
      %v1212 = vxor.u32 %v1211, 2147483648
      %v1213 = vsel %vm1130, %v1212, %v1211
      %v1214 = vsub.s32 4, %v1190
      %v1215 = vsel %vm1130, %v1214, %v1190
      %v1216 = vsel %vm1129, %v357, %v1213
      %v1217 = vsel %vm1129, 0, %v1215
      %v1218 = vcosq.f32.pop %v1216
      %v1219 = vsinq.f32.pop %v1216
      %vm1220 = vweird.f32 %v357
      %v1221 = vadd.s32 %v1217, 3
      %v1222 = vand.u32 %v1221, 3
      %vm1223 = vcmp.lt.s32.totalorder %v1222, 2
      %vm1224 = vcmp.eq.s32.totalorder %v1222, 0
      %v1225 = vxor.u32 %v1219, 2147483648
      %v1226 = vsel %vm1224, %v1218, %v1225
      %vm1227 = vcmp.eq.s32.totalorder %v1222, 2
      %v1228 = vxor.u32 %v1218, 2147483648
      %v1229 = vsel %vm1227, %v1228, %v1219
      %v1230 = vsel %vm1223, %v1226, %v1229
      %v1231 = vsel %vm1220, nan, %v1230
      %v1232 = vand.u32 2147483647, %v362
      %vm1233 = vcmp.le.f32.partialorder %v1232, 0.7853982
      %vm1234 = vcmp.lt.s32.totalorder %v362, 0
      %v1235 = vand.u32 %v362, 2139095040
      %v1236 = vshrl.u32 %v1235, 23
      %v1237 = vsub.s32 %v1236, 127
      %v1238 = vand.u32 2147483647, %v362
      %v1239 = vand.u32 %v1238, 8388607
      %v1240 = vor.u32 %v1239, 8388608
      %v1241 = vsub.s32 0, %v1240
      %v1242 = vadd.s32 %v1237, 1
      %vm1243 = vcmp.gt.s32.totalorder %v1242, 0
      %v1244 = vsel %vm1243, %v1242, 0
      %v1245 = vshrl.u32 %v1244, 5
      %v1246 = vand.u32 %v1244, 31
      %v1247 = vsub.s32 32, %v1246
      %v1248 = vshrl.u32 683565275, %v1247
      %v1249 = vshll.u32 683565275, %v1246
      %v1250 = vshrl.u32 2475754826, %v1247
      %v1251 = vor.u32 %v1249, %v1250
      %v1252 = vshll.u32 2475754826, %v1246
      %v1253 = vshrl.u32 2131351028, %v1247
      %v1254 = vor.u32 %v1252, %v1253
      %v1255 = vshll.u32 2131351028, %v1246
      %v1256 = vshrl.u32 2102212464, %v1247
      %v1257 = vor.u32 %v1255, %v1256
      %v1258 = vshll.u32 2102212464, %v1246
      %v1259 = vshrl.u32 920167782, %v1247
      %v1260 = vor.u32 %v1258, %v1259
      %v1261 = vshll.u32 920167782, %v1246
      %v1262 = vshrl.u32 1326507024, %v1247
      %v1263 = vor.u32 %v1261, %v1262
      %vm1264 = vcmp.lt.s32.totalorder %v1245, 1
      %vm1265 = vcmp.lt.s32.totalorder %v1245, 2
      %vm1266 = vcmp.lt.s32.totalorder %v1245, 3
      %vm1267 = vcmp.lt.s32.totalorder %v1245, 4
      %v1268 = vsel %vm1264, %v1248, %v1251
      %v1269 = vsel %vm1267, %v1257, 2102212464
      %v1270 = vsel %vm1266, %v1254, %v1269
      %v1271 = vsel %vm1265, %v1268, %v1270
      %v1272 = vsel %vm1264, %v1251, %v1254
      %v1273 = vsel %vm1267, %v1260, 920167782
      %v1274 = vsel %vm1266, %v1257, %v1273
      %v1275 = vsel %vm1265, %v1272, %v1274
      %v1276 = vsel %vm1264, %v1254, %v1257
      %v1277 = vsel %vm1267, %v1263, 1326507024
      %v1278 = vsel %vm1266, %v1260, %v1277
      %v1279 = vsel %vm1265, %v1276, %v1278
      %v1280 = vshll.u32 %v1240, 8
      %v1281 = vmul.u32.u64.compose %v1280, %v1279
      %v1282 = vextract.low.u32 %v1281
      %v1283 = vextract.high.u32 %v1281
      %v1284 = vmul.u32.u64.compose %v1280, %v1275
      %v1285 = vextract.low.u32 %v1284
      %v1286 = vextract.high.u32 %v1284
      %v1287 = vmul.u32 %v1280, %v1271
      %v1288 = vadd.s32 %v1283, %v1285
      %vm1289 = vc.u32 %v1283, %v1285
      %v1290 = vadd.s32 %v1286, 1
      %v1291 = vsel %vm1289, %v1290, %v1286
      %v1292 = vadd.s32 %v1287, %v1291
      %v1293 = vadd.s32 %v1292, 536870912
      %v1294 = vshrl.u32 %v1293, 30
      %v1295 = vshll.u32 %v1294, 30
      %v1296 = vsub.s32 %v1292, %v1295
      %vm1297 = vcmp.lt.s32.totalorder %v1296, 0
      %v1298 = vsub.s32 0, %v1296
      %v1299 = vsel %vm1297, %v1298, %v1296
      %v1300 = vclz %v1299
      %v1301 = vsub.s32 %v1300, 2
      %vm1302 = vcmp.gt.s32.totalorder 0, %v1301
      %v1303 = vsel %vm1302, 0, %v1301
      %v1304 = vsub.s32 32, %v1303
      %v1305 = vshll.u32 %v1296, %v1303
      %v1306 = vshrl.u32 %v1288, %v1304
      %v1307 = vor.u32 %v1305, %v1306
      %v1308 = vsub.s32 4294967266, %v1303
      %v1309 = vadd.s32 %v1308, 127
      %v1310 = vshll.u32 %v1309, 23
      %v1311 = vor.u32 4788187, %v1310
      %v1312 = vand.u32 2147483647, %v1311
      %v1314 = vcvt.s32.f32 %v1307
      %v1315 = vmul.f32 %v1314, %v1312
      %v1316 = vxor.u32 %v1315, 2147483648
      %v1317 = vsel %vm1234, %v1316, %v1315
      %v1318 = vsub.s32 4, %v1294
      %v1319 = vsel %vm1234, %v1318, %v1294
      %v1320 = vsel %vm1233, %v362, %v1317
      %v1321 = vsel %vm1233, 0, %v1319
      %v1322 = vcosq.f32.pop %v1320
      %v1323 = vsinq.f32.pop %v1320
      %vm1324 = vweird.f32 %v362
      %v1325 = vadd.s32 %v1321, 3
      %v1326 = vand.u32 %v1325, 3
      %vm1327 = vcmp.lt.s32.totalorder %v1326, 2
      %vm1328 = vcmp.eq.s32.totalorder %v1326, 0
      %v1329 = vxor.u32 %v1323, 2147483648
      %v1330 = vsel %vm1328, %v1322, %v1329
      %vm1331 = vcmp.eq.s32.totalorder %v1326, 2
      %v1332 = vxor.u32 %v1322, 2147483648
      %v1333 = vsel %vm1331, %v1332, %v1323
      %v1334 = vsel %vm1327, %v1330, %v1333
      %v1335 = vsel %vm1324, nan, %v1334
      %v1336 = vand.u32 2147483647, %v367
      %vm1337 = vcmp.le.f32.partialorder %v1336, 0.7853982
      %vm1338 = vcmp.lt.s32.totalorder %v367, 0
      %v1339 = vand.u32 %v367, 2139095040
      %v1340 = vshrl.u32 %v1339, 23
      %v1341 = vsub.s32 %v1340, 127
      %v1342 = vand.u32 2147483647, %v367
      %v1343 = vand.u32 %v1342, 8388607
      %v1344 = vor.u32 %v1343, 8388608
      %v1345 = vsub.s32 0, %v1344
      %v1346 = vadd.s32 %v1341, 1
      %vm1347 = vcmp.gt.s32.totalorder %v1346, 0
      %v1348 = vsel %vm1347, %v1346, 0
      %v1349 = vshrl.u32 %v1348, 5
      %v1350 = vand.u32 %v1348, 31
      %v1351 = vsub.s32 32, %v1350
      %v1352 = vshrl.u32 683565275, %v1351
      %v1353 = vshll.u32 683565275, %v1350
      %v1354 = vshrl.u32 2475754826, %v1351
      %v1355 = vor.u32 %v1353, %v1354
      %v1356 = vshll.u32 2475754826, %v1350
      %v1357 = vshrl.u32 2131351028, %v1351
      %v1358 = vor.u32 %v1356, %v1357
      %v1359 = vshll.u32 2131351028, %v1350
      %v1360 = vshrl.u32 2102212464, %v1351
      %v1361 = vor.u32 %v1359, %v1360
      %v1362 = vshll.u32 2102212464, %v1350
      %v1363 = vshrl.u32 920167782, %v1351
      %v1364 = vor.u32 %v1362, %v1363
      %v1365 = vshll.u32 920167782, %v1350
      %v1366 = vshrl.u32 1326507024, %v1351
      %v1367 = vor.u32 %v1365, %v1366
      %vm1368 = vcmp.lt.s32.totalorder %v1349, 1
      %vm1369 = vcmp.lt.s32.totalorder %v1349, 2
      %vm1370 = vcmp.lt.s32.totalorder %v1349, 3
      %vm1371 = vcmp.lt.s32.totalorder %v1349, 4
      %v1372 = vsel %vm1368, %v1352, %v1355
      %v1373 = vsel %vm1371, %v1361, 2102212464
      %v1374 = vsel %vm1370, %v1358, %v1373
      %v1375 = vsel %vm1369, %v1372, %v1374
      %v1376 = vsel %vm1368, %v1355, %v1358
      %v1377 = vsel %vm1371, %v1364, 920167782
      %v1378 = vsel %vm1370, %v1361, %v1377
      %v1379 = vsel %vm1369, %v1376, %v1378
      %v1380 = vsel %vm1368, %v1358, %v1361
      %v1381 = vsel %vm1371, %v1367, 1326507024
      %v1382 = vsel %vm1370, %v1364, %v1381
      %v1383 = vsel %vm1369, %v1380, %v1382
      %v1384 = vshll.u32 %v1344, 8
      %v1385 = vmul.u32.u64.compose %v1384, %v1383
      %v1386 = vextract.low.u32 %v1385
      %v1387 = vextract.high.u32 %v1385
      %v1388 = vmul.u32.u64.compose %v1384, %v1379
      %v1389 = vextract.low.u32 %v1388
      %v1390 = vextract.high.u32 %v1388
      %v1391 = vmul.u32 %v1384, %v1375
      %v1392 = vadd.s32 %v1387, %v1389
      %vm1393 = vc.u32 %v1387, %v1389
      %v1394 = vadd.s32 %v1390, 1
      %v1395 = vsel %vm1393, %v1394, %v1390
      %v1396 = vadd.s32 %v1391, %v1395
      %v1397 = vadd.s32 %v1396, 536870912
      %v1398 = vshrl.u32 %v1397, 30
      %v1399 = vshll.u32 %v1398, 30
      %v1400 = vsub.s32 %v1396, %v1399
      %vm1401 = vcmp.lt.s32.totalorder %v1400, 0
      %v1402 = vsub.s32 0, %v1400
      %v1403 = vsel %vm1401, %v1402, %v1400
      %v1404 = vclz %v1403
      %v1405 = vsub.s32 %v1404, 2
      %vm1406 = vcmp.gt.s32.totalorder 0, %v1405
      %v1407 = vsel %vm1406, 0, %v1405
      %v1408 = vsub.s32 32, %v1407
      %v1409 = vshll.u32 %v1400, %v1407
      %v1410 = vshrl.u32 %v1392, %v1408
      %v1411 = vor.u32 %v1409, %v1410
      %v1412 = vsub.s32 4294967266, %v1407
      %v1413 = vadd.s32 %v1412, 127
      %v1414 = vshll.u32 %v1413, 23
      %v1415 = vor.u32 4788187, %v1414
      %v1416 = vand.u32 2147483647, %v1415
      %v1418 = vcvt.s32.f32 %v1411
      %v1419 = vmul.f32 %v1418, %v1416
      %v1420 = vxor.u32 %v1419, 2147483648
      %v1421 = vsel %vm1338, %v1420, %v1419
      %v1422 = vsub.s32 4, %v1398
      %v1423 = vsel %vm1338, %v1422, %v1398
      %v1424 = vsel %vm1337, %v367, %v1421
      %v1425 = vsel %vm1337, 0, %v1423
      %v1426 = vcosq.f32.pop %v1424
      %v1427 = vsinq.f32.pop %v1424
      %vm1428 = vweird.f32 %v367
      %v1429 = vadd.s32 %v1425, 3
      %v1430 = vand.u32 %v1429, 3
      %vm1431 = vcmp.lt.s32.totalorder %v1430, 2
      %vm1432 = vcmp.eq.s32.totalorder %v1430, 0
      %v1433 = vxor.u32 %v1427, 2147483648
      %v1434 = vsel %vm1432, %v1426, %v1433
      %vm1435 = vcmp.eq.s32.totalorder %v1430, 2
      %v1436 = vxor.u32 %v1426, 2147483648
      %v1437 = vsel %vm1435, %v1436, %v1427
      %v1438 = vsel %vm1431, %v1434, %v1437
      %v1439 = vsel %vm1428, nan, %v1438
      %v1440 = vand.u32 2147483647, %v372
      %vm1441 = vcmp.le.f32.partialorder %v1440, 0.7853982
      %vm1442 = vcmp.lt.s32.totalorder %v372, 0
      %v1443 = vand.u32 %v372, 2139095040
      %v1444 = vshrl.u32 %v1443, 23
      %v1445 = vsub.s32 %v1444, 127
      %v1446 = vand.u32 2147483647, %v372
      %v1447 = vand.u32 %v1446, 8388607
      %v1448 = vor.u32 %v1447, 8388608
      %v1449 = vsub.s32 0, %v1448
      %v1450 = vadd.s32 %v1445, 1
      %vm1451 = vcmp.gt.s32.totalorder %v1450, 0
      %v1452 = vsel %vm1451, %v1450, 0
      %v1453 = vshrl.u32 %v1452, 5
      %v1454 = vand.u32 %v1452, 31
      %v1455 = vsub.s32 32, %v1454
      %v1456 = vshrl.u32 683565275, %v1455
      %v1457 = vshll.u32 683565275, %v1454
      %v1458 = vshrl.u32 2475754826, %v1455
      %v1459 = vor.u32 %v1457, %v1458
      %v1460 = vshll.u32 2475754826, %v1454
      %v1461 = vshrl.u32 2131351028, %v1455
      %v1462 = vor.u32 %v1460, %v1461
      %v1463 = vshll.u32 2131351028, %v1454
      %v1464 = vshrl.u32 2102212464, %v1455
      %v1465 = vor.u32 %v1463, %v1464
      %v1466 = vshll.u32 2102212464, %v1454
      %v1467 = vshrl.u32 920167782, %v1455
      %v1468 = vor.u32 %v1466, %v1467
      %v1469 = vshll.u32 920167782, %v1454
      %v1470 = vshrl.u32 1326507024, %v1455
      %v1471 = vor.u32 %v1469, %v1470
      %vm1472 = vcmp.lt.s32.totalorder %v1453, 1
      %vm1473 = vcmp.lt.s32.totalorder %v1453, 2
      %vm1474 = vcmp.lt.s32.totalorder %v1453, 3
      %vm1475 = vcmp.lt.s32.totalorder %v1453, 4
      %v1476 = vsel %vm1472, %v1456, %v1459
      %v1477 = vsel %vm1475, %v1465, 2102212464
      %v1478 = vsel %vm1474, %v1462, %v1477
      %v1479 = vsel %vm1473, %v1476, %v1478
      %v1480 = vsel %vm1472, %v1459, %v1462
      %v1481 = vsel %vm1475, %v1468, 920167782
      %v1482 = vsel %vm1474, %v1465, %v1481
      %v1483 = vsel %vm1473, %v1480, %v1482
      %v1484 = vsel %vm1472, %v1462, %v1465
      %v1485 = vsel %vm1475, %v1471, 1326507024
      %v1486 = vsel %vm1474, %v1468, %v1485
      %v1487 = vsel %vm1473, %v1484, %v1486
      %v1488 = vshll.u32 %v1448, 8
      %v1489 = vmul.u32.u64.compose %v1488, %v1487
      %v1490 = vextract.low.u32 %v1489
      %v1491 = vextract.high.u32 %v1489
      %v1492 = vmul.u32.u64.compose %v1488, %v1483
      %v1493 = vextract.low.u32 %v1492
      %v1494 = vextract.high.u32 %v1492
      %v1495 = vmul.u32 %v1488, %v1479
      %v1496 = vadd.s32 %v1491, %v1493
      %vm1497 = vc.u32 %v1491, %v1493
      %v1498 = vadd.s32 %v1494, 1
      %v1499 = vsel %vm1497, %v1498, %v1494
      %v1500 = vadd.s32 %v1495, %v1499
      %v1501 = vadd.s32 %v1500, 536870912
      %v1502 = vshrl.u32 %v1501, 30
      %v1503 = vshll.u32 %v1502, 30
      %v1504 = vsub.s32 %v1500, %v1503
      %vm1505 = vcmp.lt.s32.totalorder %v1504, 0
      %v1506 = vsub.s32 0, %v1504
      %v1507 = vsel %vm1505, %v1506, %v1504
      %v1508 = vclz %v1507
      %v1509 = vsub.s32 %v1508, 2
      %vm1510 = vcmp.gt.s32.totalorder 0, %v1509
      %v1511 = vsel %vm1510, 0, %v1509
      %v1512 = vsub.s32 32, %v1511
      %v1513 = vshll.u32 %v1504, %v1511
      %v1514 = vshrl.u32 %v1496, %v1512
      %v1515 = vor.u32 %v1513, %v1514
      %v1516 = vsub.s32 4294967266, %v1511
      %v1517 = vadd.s32 %v1516, 127
      %v1518 = vshll.u32 %v1517, 23
      %v1519 = vor.u32 4788187, %v1518
      %v1520 = vand.u32 2147483647, %v1519
      %v1522 = vcvt.s32.f32 %v1515
      %v1523 = vmul.f32 %v1522, %v1520
      %v1524 = vxor.u32 %v1523, 2147483648
      %v1525 = vsel %vm1442, %v1524, %v1523
      %v1526 = vsub.s32 4, %v1502
      %v1527 = vsel %vm1442, %v1526, %v1502
      %v1528 = vsel %vm1441, %v372, %v1525
      %v1529 = vsel %vm1441, 0, %v1527
      %v1530 = vcosq.f32.pop %v1528
      %v1531 = vsinq.f32.pop %v1528
      %vm1532 = vweird.f32 %v372
      %v1533 = vadd.s32 %v1529, 3
      %v1534 = vand.u32 %v1533, 3
      %vm1535 = vcmp.lt.s32.totalorder %v1534, 2
      %vm1536 = vcmp.eq.s32.totalorder %v1534, 0
      %v1537 = vxor.u32 %v1531, 2147483648
      %v1538 = vsel %vm1536, %v1530, %v1537
      %vm1539 = vcmp.eq.s32.totalorder %v1534, 2
      %v1540 = vxor.u32 %v1530, 2147483648
      %v1541 = vsel %vm1539, %v1540, %v1531
      %v1542 = vsel %vm1535, %v1538, %v1541
      %v1543 = vsel %vm1532, nan, %v1542
      %v1544 = vand.u32 2147483647, %v377
      %vm1545 = vcmp.le.f32.partialorder %v1544, 0.7853982
      %vm1546 = vcmp.lt.s32.totalorder %v377, 0
      %v1547 = vand.u32 %v377, 2139095040
      %v1548 = vshrl.u32 %v1547, 23
      %v1549 = vsub.s32 %v1548, 127
      %v1550 = vand.u32 2147483647, %v377
      %v1551 = vand.u32 %v1550, 8388607
      %v1552 = vor.u32 %v1551, 8388608
      %v1553 = vsub.s32 0, %v1552
      %v1554 = vadd.s32 %v1549, 1
      %vm1555 = vcmp.gt.s32.totalorder %v1554, 0
      %v1556 = vsel %vm1555, %v1554, 0
      %v1557 = vshrl.u32 %v1556, 5
      %v1558 = vand.u32 %v1556, 31
      %v1559 = vsub.s32 32, %v1558
      %v1560 = vshrl.u32 683565275, %v1559
      %v1561 = vshll.u32 683565275, %v1558
      %v1562 = vshrl.u32 2475754826, %v1559
      %v1563 = vor.u32 %v1561, %v1562
      %v1564 = vshll.u32 2475754826, %v1558
      %v1565 = vshrl.u32 2131351028, %v1559
      %v1566 = vor.u32 %v1564, %v1565
      %v1567 = vshll.u32 2131351028, %v1558
      %v1568 = vshrl.u32 2102212464, %v1559
      %v1569 = vor.u32 %v1567, %v1568
      %v1570 = vshll.u32 2102212464, %v1558
      %v1571 = vshrl.u32 920167782, %v1559
      %v1572 = vor.u32 %v1570, %v1571
      %v1573 = vshll.u32 920167782, %v1558
      %v1574 = vshrl.u32 1326507024, %v1559
      %v1575 = vor.u32 %v1573, %v1574
      %vm1576 = vcmp.lt.s32.totalorder %v1557, 1
      %vm1577 = vcmp.lt.s32.totalorder %v1557, 2
      %vm1578 = vcmp.lt.s32.totalorder %v1557, 3
      %vm1579 = vcmp.lt.s32.totalorder %v1557, 4
      %v1580 = vsel %vm1576, %v1560, %v1563
      %v1581 = vsel %vm1579, %v1569, 2102212464
      %v1582 = vsel %vm1578, %v1566, %v1581
      %v1583 = vsel %vm1577, %v1580, %v1582
      %v1584 = vsel %vm1576, %v1563, %v1566
      %v1585 = vsel %vm1579, %v1572, 920167782
      %v1586 = vsel %vm1578, %v1569, %v1585
      %v1587 = vsel %vm1577, %v1584, %v1586
      %v1588 = vsel %vm1576, %v1566, %v1569
      %v1589 = vsel %vm1579, %v1575, 1326507024
      %v1590 = vsel %vm1578, %v1572, %v1589
      %v1591 = vsel %vm1577, %v1588, %v1590
      %v1592 = vshll.u32 %v1552, 8
      %v1593 = vmul.u32.u64.compose %v1592, %v1591
      %v1594 = vextract.low.u32 %v1593
      %v1595 = vextract.high.u32 %v1593
      %v1596 = vmul.u32.u64.compose %v1592, %v1587
      %v1597 = vextract.low.u32 %v1596
      %v1598 = vextract.high.u32 %v1596
      %v1599 = vmul.u32 %v1592, %v1583
      %v1600 = vadd.s32 %v1595, %v1597
      %vm1601 = vc.u32 %v1595, %v1597
      %v1602 = vadd.s32 %v1598, 1
      %v1603 = vsel %vm1601, %v1602, %v1598
      %v1604 = vadd.s32 %v1599, %v1603
      %v1605 = vadd.s32 %v1604, 536870912
      %v1606 = vshrl.u32 %v1605, 30
      %v1607 = vshll.u32 %v1606, 30
      %v1608 = vsub.s32 %v1604, %v1607
      %vm1609 = vcmp.lt.s32.totalorder %v1608, 0
      %v1610 = vsub.s32 0, %v1608
      %v1611 = vsel %vm1609, %v1610, %v1608
      %v1612 = vclz %v1611
      %v1613 = vsub.s32 %v1612, 2
      %vm1614 = vcmp.gt.s32.totalorder 0, %v1613
      %v1615 = vsel %vm1614, 0, %v1613
      %v1616 = vsub.s32 32, %v1615
      %v1617 = vshll.u32 %v1608, %v1615
      %v1618 = vshrl.u32 %v1600, %v1616
      %v1619 = vor.u32 %v1617, %v1618
      %v1620 = vsub.s32 4294967266, %v1615
      %v1621 = vadd.s32 %v1620, 127
      %v1622 = vshll.u32 %v1621, 23
      %v1623 = vor.u32 4788187, %v1622
      %v1624 = vand.u32 2147483647, %v1623
      %v1626 = vcvt.s32.f32 %v1619
      %v1627 = vmul.f32 %v1626, %v1624
      %v1628 = vxor.u32 %v1627, 2147483648
      %v1629 = vsel %vm1546, %v1628, %v1627
      %v1630 = vsub.s32 4, %v1606
      %v1631 = vsel %vm1546, %v1630, %v1606
      %v1632 = vsel %vm1545, %v377, %v1629
      %v1633 = vsel %vm1545, 0, %v1631
      %v1634 = vcosq.f32.pop %v1632
      %v1635 = vsinq.f32.pop %v1632
      %vm1636 = vweird.f32 %v377
      %v1637 = vadd.s32 %v1633, 3
      %v1638 = vand.u32 %v1637, 3
      %vm1639 = vcmp.lt.s32.totalorder %v1638, 2
      %vm1640 = vcmp.eq.s32.totalorder %v1638, 0
      %v1641 = vxor.u32 %v1635, 2147483648
      %v1642 = vsel %vm1640, %v1634, %v1641
      %vm1643 = vcmp.eq.s32.totalorder %v1638, 2
      %v1644 = vxor.u32 %v1634, 2147483648
      %v1645 = vsel %vm1643, %v1644, %v1635
      %v1646 = vsel %vm1639, %v1642, %v1645
      %v1647 = vsel %vm1636, nan, %v1646
      %v1648 = vand.u32 2147483647, %v382
      %vm1649 = vcmp.le.f32.partialorder %v1648, 0.7853982
      %vm1650 = vcmp.lt.s32.totalorder %v382, 0
      %v1651 = vand.u32 %v382, 2139095040
      %v1652 = vshrl.u32 %v1651, 23
      %v1653 = vsub.s32 %v1652, 127
      %v1654 = vand.u32 2147483647, %v382
      %v1655 = vand.u32 %v1654, 8388607
      %v1656 = vor.u32 %v1655, 8388608
      %v1657 = vsub.s32 0, %v1656
      %v1658 = vadd.s32 %v1653, 1
      %vm1659 = vcmp.gt.s32.totalorder %v1658, 0
      %v1660 = vsel %vm1659, %v1658, 0
      %v1661 = vshrl.u32 %v1660, 5
      %v1662 = vand.u32 %v1660, 31
      %v1663 = vsub.s32 32, %v1662
      %v1664 = vshrl.u32 683565275, %v1663
      %v1665 = vshll.u32 683565275, %v1662
      %v1666 = vshrl.u32 2475754826, %v1663
      %v1667 = vor.u32 %v1665, %v1666
      %v1668 = vshll.u32 2475754826, %v1662
      %v1669 = vshrl.u32 2131351028, %v1663
      %v1670 = vor.u32 %v1668, %v1669
      %v1671 = vshll.u32 2131351028, %v1662
      %v1672 = vshrl.u32 2102212464, %v1663
      %v1673 = vor.u32 %v1671, %v1672
      %v1674 = vshll.u32 2102212464, %v1662
      %v1675 = vshrl.u32 920167782, %v1663
      %v1676 = vor.u32 %v1674, %v1675
      %v1677 = vshll.u32 920167782, %v1662
      %v1678 = vshrl.u32 1326507024, %v1663
      %v1679 = vor.u32 %v1677, %v1678
      %vm1680 = vcmp.lt.s32.totalorder %v1661, 1
      %vm1681 = vcmp.lt.s32.totalorder %v1661, 2
      %vm1682 = vcmp.lt.s32.totalorder %v1661, 3
      %vm1683 = vcmp.lt.s32.totalorder %v1661, 4
      %v1684 = vsel %vm1680, %v1664, %v1667
      %v1685 = vsel %vm1683, %v1673, 2102212464
      %v1686 = vsel %vm1682, %v1670, %v1685
      %v1687 = vsel %vm1681, %v1684, %v1686
      %v1688 = vsel %vm1680, %v1667, %v1670
      %v1689 = vsel %vm1683, %v1676, 920167782
      %v1690 = vsel %vm1682, %v1673, %v1689
      %v1691 = vsel %vm1681, %v1688, %v1690
      %v1692 = vsel %vm1680, %v1670, %v1673
      %v1693 = vsel %vm1683, %v1679, 1326507024
      %v1694 = vsel %vm1682, %v1676, %v1693
      %v1695 = vsel %vm1681, %v1692, %v1694
      %v1696 = vshll.u32 %v1656, 8
      %v1697 = vmul.u32.u64.compose %v1696, %v1695
      %v1698 = vextract.low.u32 %v1697
      %v1699 = vextract.high.u32 %v1697
      %v1700 = vmul.u32.u64.compose %v1696, %v1691
      %v1701 = vextract.low.u32 %v1700
      %v1702 = vextract.high.u32 %v1700
      %v1703 = vmul.u32 %v1696, %v1687
      %v1704 = vadd.s32 %v1699, %v1701
      %vm1705 = vc.u32 %v1699, %v1701
      %v1706 = vadd.s32 %v1702, 1
      %v1707 = vsel %vm1705, %v1706, %v1702
      %v1708 = vadd.s32 %v1703, %v1707
      %v1709 = vadd.s32 %v1708, 536870912
      %v1710 = vshrl.u32 %v1709, 30
      %v1711 = vshll.u32 %v1710, 30
      %v1712 = vsub.s32 %v1708, %v1711
      %vm1713 = vcmp.lt.s32.totalorder %v1712, 0
      %v1714 = vsub.s32 0, %v1712
      %v1715 = vsel %vm1713, %v1714, %v1712
      %v1716 = vclz %v1715
      %v1717 = vsub.s32 %v1716, 2
      %vm1718 = vcmp.gt.s32.totalorder 0, %v1717
      %v1719 = vsel %vm1718, 0, %v1717
      %v1720 = vsub.s32 32, %v1719
      %v1721 = vshll.u32 %v1712, %v1719
      %v1722 = vshrl.u32 %v1704, %v1720
      %v1723 = vor.u32 %v1721, %v1722
      %v1724 = vsub.s32 4294967266, %v1719
      %v1725 = vadd.s32 %v1724, 127
      %v1726 = vshll.u32 %v1725, 23
      %v1727 = vor.u32 4788187, %v1726
      %v1728 = vand.u32 2147483647, %v1727
      %v1730 = vcvt.s32.f32 %v1723
      %v1731 = vmul.f32 %v1730, %v1728
      %v1732 = vxor.u32 %v1731, 2147483648
      %v1733 = vsel %vm1650, %v1732, %v1731
      %v1734 = vsub.s32 4, %v1710
      %v1735 = vsel %vm1650, %v1734, %v1710
      %v1736 = vsel %vm1649, %v382, %v1733
      %v1737 = vsel %vm1649, 0, %v1735
      %v1738 = vcosq.f32.pop %v1736
      %v1739 = vsinq.f32.pop %v1736
      %vm1740 = vweird.f32 %v382
      %v1741 = vadd.s32 %v1737, 3
      %v1742 = vand.u32 %v1741, 3
      %vm1743 = vcmp.lt.s32.totalorder %v1742, 2
      %vm1744 = vcmp.eq.s32.totalorder %v1742, 0
      %v1745 = vxor.u32 %v1739, 2147483648
      %v1746 = vsel %vm1744, %v1738, %v1745
      %vm1747 = vcmp.eq.s32.totalorder %v1742, 2
      %v1748 = vxor.u32 %v1738, 2147483648
      %v1749 = vsel %vm1747, %v1748, %v1739
      %v1750 = vsel %vm1743, %v1746, %v1749
      %v1751 = vsel %vm1740, nan, %v1750
      %v1752 = vand.u32 2147483647, %v387
      %vm1753 = vcmp.le.f32.partialorder %v1752, 0.7853982
      %vm1754 = vcmp.lt.s32.totalorder %v387, 0
      %v1755 = vand.u32 %v387, 2139095040
      %v1756 = vshrl.u32 %v1755, 23
      %v1757 = vsub.s32 %v1756, 127
      %v1758 = vand.u32 2147483647, %v387
      %v1759 = vand.u32 %v1758, 8388607
      %v1760 = vor.u32 %v1759, 8388608
      %v1761 = vsub.s32 0, %v1760
      %v1762 = vadd.s32 %v1757, 1
      %vm1763 = vcmp.gt.s32.totalorder %v1762, 0
      %v1764 = vsel %vm1763, %v1762, 0
      %v1765 = vshrl.u32 %v1764, 5
      %v1766 = vand.u32 %v1764, 31
      %v1767 = vsub.s32 32, %v1766
      %v1768 = vshrl.u32 683565275, %v1767
      %v1769 = vshll.u32 683565275, %v1766
      %v1770 = vshrl.u32 2475754826, %v1767
      %v1771 = vor.u32 %v1769, %v1770
      %v1772 = vshll.u32 2475754826, %v1766
      %v1773 = vshrl.u32 2131351028, %v1767
      %v1774 = vor.u32 %v1772, %v1773
      %v1775 = vshll.u32 2131351028, %v1766
      %v1776 = vshrl.u32 2102212464, %v1767
      %v1777 = vor.u32 %v1775, %v1776
      %v1778 = vshll.u32 2102212464, %v1766
      %v1779 = vshrl.u32 920167782, %v1767
      %v1780 = vor.u32 %v1778, %v1779
      %v1781 = vshll.u32 920167782, %v1766
      %v1782 = vshrl.u32 1326507024, %v1767
      %v1783 = vor.u32 %v1781, %v1782
      %vm1784 = vcmp.lt.s32.totalorder %v1765, 1
      %vm1785 = vcmp.lt.s32.totalorder %v1765, 2
      %vm1786 = vcmp.lt.s32.totalorder %v1765, 3
      %vm1787 = vcmp.lt.s32.totalorder %v1765, 4
      %v1788 = vsel %vm1784, %v1768, %v1771
      %v1789 = vsel %vm1787, %v1777, 2102212464
      %v1790 = vsel %vm1786, %v1774, %v1789
      %v1791 = vsel %vm1785, %v1788, %v1790
      %v1792 = vsel %vm1784, %v1771, %v1774
      %v1793 = vsel %vm1787, %v1780, 920167782
      %v1794 = vsel %vm1786, %v1777, %v1793
      %v1795 = vsel %vm1785, %v1792, %v1794
      %v1796 = vsel %vm1784, %v1774, %v1777
      %v1797 = vsel %vm1787, %v1783, 1326507024
      %v1798 = vsel %vm1786, %v1780, %v1797
      %v1799 = vsel %vm1785, %v1796, %v1798
      %v1800 = vshll.u32 %v1760, 8
      %v1801 = vmul.u32.u64.compose %v1800, %v1799
      %v1802 = vextract.low.u32 %v1801
      %v1803 = vextract.high.u32 %v1801
      %v1804 = vmul.u32.u64.compose %v1800, %v1795
      %v1805 = vextract.low.u32 %v1804
      %v1806 = vextract.high.u32 %v1804
      %v1807 = vmul.u32 %v1800, %v1791
      %v1808 = vadd.s32 %v1803, %v1805
      %vm1809 = vc.u32 %v1803, %v1805
      %v1810 = vadd.s32 %v1806, 1
      %v1811 = vsel %vm1809, %v1810, %v1806
      %v1812 = vadd.s32 %v1807, %v1811
      %v1813 = vadd.s32 %v1812, 536870912
      %v1814 = vshrl.u32 %v1813, 30
      %v1815 = vshll.u32 %v1814, 30
      %v1816 = vsub.s32 %v1812, %v1815
      %vm1817 = vcmp.lt.s32.totalorder %v1816, 0
      %v1818 = vsub.s32 0, %v1816
      %v1819 = vsel %vm1817, %v1818, %v1816
      %v1820 = vclz %v1819
      %v1821 = vsub.s32 %v1820, 2
      %vm1822 = vcmp.gt.s32.totalorder 0, %v1821
      %v1823 = vsel %vm1822, 0, %v1821
      %v1824 = vsub.s32 32, %v1823
      %v1825 = vshll.u32 %v1816, %v1823
      %v1826 = vshrl.u32 %v1808, %v1824
      %v1827 = vor.u32 %v1825, %v1826
      %v1828 = vsub.s32 4294967266, %v1823
      %v1829 = vadd.s32 %v1828, 127
      %v1830 = vshll.u32 %v1829, 23
      %v1831 = vor.u32 4788187, %v1830
      %v1832 = vand.u32 2147483647, %v1831
      %v1834 = vcvt.s32.f32 %v1827
      %v1835 = vmul.f32 %v1834, %v1832
      %v1836 = vxor.u32 %v1835, 2147483648
      %v1837 = vsel %vm1754, %v1836, %v1835
      %v1838 = vsub.s32 4, %v1814
      %v1839 = vsel %vm1754, %v1838, %v1814
      %v1840 = vsel %vm1753, %v387, %v1837
      %v1841 = vsel %vm1753, 0, %v1839
      %v1842 = vcosq.f32.pop %v1840
      %v1843 = vsinq.f32.pop %v1840
      %vm1844 = vweird.f32 %v387
      %v1845 = vadd.s32 %v1841, 3
      %v1846 = vand.u32 %v1845, 3
      %vm1847 = vcmp.lt.s32.totalorder %v1846, 2
      %vm1848 = vcmp.eq.s32.totalorder %v1846, 0
      %v1849 = vxor.u32 %v1843, 2147483648
      %v1850 = vsel %vm1848, %v1842, %v1849
      %vm1851 = vcmp.eq.s32.totalorder %v1846, 2
      %v1852 = vxor.u32 %v1842, 2147483648
      %v1853 = vsel %vm1851, %v1852, %v1843
      %v1854 = vsel %vm1847, %v1850, %v1853
      %v1855 = vsel %vm1844, nan, %v1854
      %v1856 = vand.u32 2147483647, %v392
      %vm1857 = vcmp.le.f32.partialorder %v1856, 0.7853982
      %vm1858 = vcmp.lt.s32.totalorder %v392, 0
      %v1859 = vand.u32 %v392, 2139095040
      %v1860 = vshrl.u32 %v1859, 23
      %v1861 = vsub.s32 %v1860, 127
      %v1862 = vand.u32 2147483647, %v392
      %v1863 = vand.u32 %v1862, 8388607
      %v1864 = vor.u32 %v1863, 8388608
      %v1865 = vsub.s32 0, %v1864
      %v1866 = vadd.s32 %v1861, 1
      %vm1867 = vcmp.gt.s32.totalorder %v1866, 0
      %v1868 = vsel %vm1867, %v1866, 0
      %v1869 = vshrl.u32 %v1868, 5
      %v1870 = vand.u32 %v1868, 31
      %v1871 = vsub.s32 32, %v1870
      %v1872 = vshrl.u32 683565275, %v1871
      %v1873 = vshll.u32 683565275, %v1870
      %v1874 = vshrl.u32 2475754826, %v1871
      %v1875 = vor.u32 %v1873, %v1874
      %v1876 = vshll.u32 2475754826, %v1870
      %v1877 = vshrl.u32 2131351028, %v1871
      %v1878 = vor.u32 %v1876, %v1877
      %v1879 = vshll.u32 2131351028, %v1870
      %v1880 = vshrl.u32 2102212464, %v1871
      %v1881 = vor.u32 %v1879, %v1880
      %v1882 = vshll.u32 2102212464, %v1870
      %v1883 = vshrl.u32 920167782, %v1871
      %v1884 = vor.u32 %v1882, %v1883
      %v1885 = vshll.u32 920167782, %v1870
      %v1886 = vshrl.u32 1326507024, %v1871
      %v1887 = vor.u32 %v1885, %v1886
      %vm1888 = vcmp.lt.s32.totalorder %v1869, 1
      %vm1889 = vcmp.lt.s32.totalorder %v1869, 2
      %vm1890 = vcmp.lt.s32.totalorder %v1869, 3
      %vm1891 = vcmp.lt.s32.totalorder %v1869, 4
      %v1892 = vsel %vm1888, %v1872, %v1875
      %v1893 = vsel %vm1891, %v1881, 2102212464
      %v1894 = vsel %vm1890, %v1878, %v1893
      %v1895 = vsel %vm1889, %v1892, %v1894
      %v1896 = vsel %vm1888, %v1875, %v1878
      %v1897 = vsel %vm1891, %v1884, 920167782
      %v1898 = vsel %vm1890, %v1881, %v1897
      %v1899 = vsel %vm1889, %v1896, %v1898
      %v1900 = vsel %vm1888, %v1878, %v1881
      %v1901 = vsel %vm1891, %v1887, 1326507024
      %v1902 = vsel %vm1890, %v1884, %v1901
      %v1903 = vsel %vm1889, %v1900, %v1902
      %v1904 = vshll.u32 %v1864, 8
      %v1905 = vmul.u32.u64.compose %v1904, %v1903
      %v1906 = vextract.low.u32 %v1905
      %v1907 = vextract.high.u32 %v1905
      %v1908 = vmul.u32.u64.compose %v1904, %v1899
      %v1909 = vextract.low.u32 %v1908
      %v1910 = vextract.high.u32 %v1908
      %v1911 = vmul.u32 %v1904, %v1895
      %v1912 = vadd.s32 %v1907, %v1909
      %vm1913 = vc.u32 %v1907, %v1909
      %v1914 = vadd.s32 %v1910, 1
      %v1915 = vsel %vm1913, %v1914, %v1910
      %v1916 = vadd.s32 %v1911, %v1915
      %v1917 = vadd.s32 %v1916, 536870912
      %v1918 = vshrl.u32 %v1917, 30
      %v1919 = vshll.u32 %v1918, 30
      %v1920 = vsub.s32 %v1916, %v1919
      %vm1921 = vcmp.lt.s32.totalorder %v1920, 0
      %v1922 = vsub.s32 0, %v1920
      %v1923 = vsel %vm1921, %v1922, %v1920
      %v1924 = vclz %v1923
      %v1925 = vsub.s32 %v1924, 2
      %vm1926 = vcmp.gt.s32.totalorder 0, %v1925
      %v1927 = vsel %vm1926, 0, %v1925
      %v1928 = vsub.s32 32, %v1927
      %v1929 = vshll.u32 %v1920, %v1927
      %v1930 = vshrl.u32 %v1912, %v1928
      %v1931 = vor.u32 %v1929, %v1930
      %v1932 = vsub.s32 4294967266, %v1927
      %v1933 = vadd.s32 %v1932, 127
      %v1934 = vshll.u32 %v1933, 23
      %v1935 = vor.u32 4788187, %v1934
      %v1936 = vand.u32 2147483647, %v1935
      %v1938 = vcvt.s32.f32 %v1931
      %v1939 = vmul.f32 %v1938, %v1936
      %v1940 = vxor.u32 %v1939, 2147483648
      %v1941 = vsel %vm1858, %v1940, %v1939
      %v1942 = vsub.s32 4, %v1918
      %v1943 = vsel %vm1858, %v1942, %v1918
      %v1944 = vsel %vm1857, %v392, %v1941
      %v1945 = vsel %vm1857, 0, %v1943
      %v1946 = vcosq.f32.pop %v1944
      %v1947 = vsinq.f32.pop %v1944
      %vm1948 = vweird.f32 %v392
      %v1949 = vadd.s32 %v1945, 3
      %v1950 = vand.u32 %v1949, 3
      %vm1951 = vcmp.lt.s32.totalorder %v1950, 2
      %vm1952 = vcmp.eq.s32.totalorder %v1950, 0
      %v1953 = vxor.u32 %v1947, 2147483648
      %v1954 = vsel %vm1952, %v1946, %v1953
      %vm1955 = vcmp.eq.s32.totalorder %v1950, 2
      %v1956 = vxor.u32 %v1946, 2147483648
      %v1957 = vsel %vm1955, %v1956, %v1947
      %v1958 = vsel %vm1951, %v1954, %v1957
      %v1959 = vsel %vm1948, nan, %v1958
      %v1960 = vand.u32 2147483647, %v397
      %vm1961 = vcmp.le.f32.partialorder %v1960, 0.7853982
      %vm1962 = vcmp.lt.s32.totalorder %v397, 0
      %v1963 = vand.u32 %v397, 2139095040
      %v1964 = vshrl.u32 %v1963, 23
      %v1965 = vsub.s32 %v1964, 127
      %v1966 = vand.u32 2147483647, %v397
      %v1967 = vand.u32 %v1966, 8388607
      %v1968 = vor.u32 %v1967, 8388608
      %v1969 = vsub.s32 0, %v1968
      %v1970 = vadd.s32 %v1965, 1
      %vm1971 = vcmp.gt.s32.totalorder %v1970, 0
      %v1972 = vsel %vm1971, %v1970, 0
      %v1973 = vshrl.u32 %v1972, 5
      %v1974 = vand.u32 %v1972, 31
      %v1975 = vsub.s32 32, %v1974
      %v1976 = vshrl.u32 683565275, %v1975
      %v1977 = vshll.u32 683565275, %v1974
      %v1978 = vshrl.u32 2475754826, %v1975
      %v1979 = vor.u32 %v1977, %v1978
      %v1980 = vshll.u32 2475754826, %v1974
      %v1981 = vshrl.u32 2131351028, %v1975
      %v1982 = vor.u32 %v1980, %v1981
      %v1983 = vshll.u32 2131351028, %v1974
      %v1984 = vshrl.u32 2102212464, %v1975
      %v1985 = vor.u32 %v1983, %v1984
      %v1986 = vshll.u32 2102212464, %v1974
      %v1987 = vshrl.u32 920167782, %v1975
      %v1988 = vor.u32 %v1986, %v1987
      %v1989 = vshll.u32 920167782, %v1974
      %v1990 = vshrl.u32 1326507024, %v1975
      %v1991 = vor.u32 %v1989, %v1990
      %vm1992 = vcmp.lt.s32.totalorder %v1973, 1
      %vm1993 = vcmp.lt.s32.totalorder %v1973, 2
      %vm1994 = vcmp.lt.s32.totalorder %v1973, 3
      %vm1995 = vcmp.lt.s32.totalorder %v1973, 4
      %v1996 = vsel %vm1992, %v1976, %v1979
      %v1997 = vsel %vm1995, %v1985, 2102212464
      %v1998 = vsel %vm1994, %v1982, %v1997
      %v1999 = vsel %vm1993, %v1996, %v1998
      %v2000 = vsel %vm1992, %v1979, %v1982
      %v2001 = vsel %vm1995, %v1988, 920167782
      %v2002 = vsel %vm1994, %v1985, %v2001
      %v2003 = vsel %vm1993, %v2000, %v2002
      %v2004 = vsel %vm1992, %v1982, %v1985
      %v2005 = vsel %vm1995, %v1991, 1326507024
      %v2006 = vsel %vm1994, %v1988, %v2005
      %v2007 = vsel %vm1993, %v2004, %v2006
      %v2008 = vshll.u32 %v1968, 8
      %v2009 = vmul.u32.u64.compose %v2008, %v2007
      %v2010 = vextract.low.u32 %v2009
      %v2011 = vextract.high.u32 %v2009
      %v2012 = vmul.u32.u64.compose %v2008, %v2003
      %v2013 = vextract.low.u32 %v2012
      %v2014 = vextract.high.u32 %v2012
      %v2015 = vmul.u32 %v2008, %v1999
      %v2016 = vadd.s32 %v2011, %v2013
      %vm2017 = vc.u32 %v2011, %v2013
      %v2018 = vadd.s32 %v2014, 1
      %v2019 = vsel %vm2017, %v2018, %v2014
      %v2020 = vadd.s32 %v2015, %v2019
      %v2021 = vadd.s32 %v2020, 536870912
      %v2022 = vshrl.u32 %v2021, 30
      %v2023 = vshll.u32 %v2022, 30
      %v2024 = vsub.s32 %v2020, %v2023
      %vm2025 = vcmp.lt.s32.totalorder %v2024, 0
      %v2026 = vsub.s32 0, %v2024
      %v2027 = vsel %vm2025, %v2026, %v2024
      %v2028 = vclz %v2027
      %v2029 = vsub.s32 %v2028, 2
      %vm2030 = vcmp.gt.s32.totalorder 0, %v2029
      %v2031 = vsel %vm2030, 0, %v2029
      %v2032 = vsub.s32 32, %v2031
      %v2033 = vshll.u32 %v2024, %v2031
      %v2034 = vshrl.u32 %v2016, %v2032
      %v2035 = vor.u32 %v2033, %v2034
      %v2036 = vsub.s32 4294967266, %v2031
      %v2037 = vadd.s32 %v2036, 127
      %v2038 = vshll.u32 %v2037, 23
      %v2039 = vor.u32 4788187, %v2038
      %v2040 = vand.u32 2147483647, %v2039
      %v2042 = vcvt.s32.f32 %v2035
      %v2043 = vmul.f32 %v2042, %v2040
      %v2044 = vxor.u32 %v2043, 2147483648
      %v2045 = vsel %vm1962, %v2044, %v2043
      %v2046 = vsub.s32 4, %v2022
      %v2047 = vsel %vm1962, %v2046, %v2022
      %v2048 = vsel %vm1961, %v397, %v2045
      %v2049 = vsel %vm1961, 0, %v2047
      %v2050 = vcosq.f32.pop %v2048
      %v2051 = vsinq.f32.pop %v2048
      %vm2052 = vweird.f32 %v397
      %v2053 = vadd.s32 %v2049, 3
      %v2054 = vand.u32 %v2053, 3
      %vm2055 = vcmp.lt.s32.totalorder %v2054, 2
      %vm2056 = vcmp.eq.s32.totalorder %v2054, 0
      %v2057 = vxor.u32 %v2051, 2147483648
      %v2058 = vsel %vm2056, %v2050, %v2057
      %vm2059 = vcmp.eq.s32.totalorder %v2054, 2
      %v2060 = vxor.u32 %v2050, 2147483648
      %v2061 = vsel %vm2059, %v2060, %v2051
      %v2062 = vsel %vm2055, %v2058, %v2061
      %v2063 = vsel %vm2052, nan, %v2062
      %2064 = vst [vmem:[%s172] sm:$0xff] %v503
      %2065 = vst [vmem:[%s172 + $0x8] sm:$0xff] %v607
      %2066 = vst [vmem:[%s172 + $0x10] sm:$0xff] %v711
      %2067 = vst [vmem:[%s172 + $0x18] sm:$0xff] %v815
      %2068 = vst [vmem:[%s172 + $0x20] sm:$0xff] %v919
      %2069 = vst [vmem:[%s172 + $0x28] sm:$0xff] %v1023
      %2070 = vst [vmem:[%s172 + $0x30] sm:$0xff] %v1127
      %2071 = vst [vmem:[%s172 + $0x38] sm:$0xff] %v1231
      %2072 = vst [vmem:[%s172 + $0x40] sm:$0xff] %v1335
      %2073 = vst [vmem:[%s172 + $0x48] sm:$0xff] %v1439
      %2074 = vst [vmem:[%s172 + $0x50] sm:$0xff] %v1543
      %2075 = vst [vmem:[%s172 + $0x58] sm:$0xff] %v1647
      %2076 = vst [vmem:[%s172 + $0x60] sm:$0xff] %v1751
      %2077 = vst [vmem:[%s172 + $0x68] sm:$0xff] %v1855
      %2078 = vst [vmem:[%s172 + $0x70] sm:$0xff] %v1959
      %2079 = vst [vmem:[%s172 + $0x78] sm:$0xff] %v2063
      %s2080 = smul.u32 16, %s14
      %p2081 = scmp.lt.s32.totalorder %s2080, 31
      %s2082 = scalar_select %p2081, %s2080, 31
      %s2083 = smul.addr %s2082, 8
      %s2084 = scalar_lea.vmem %s3, %s2083
      // Predicated region
      $region33: #{sine_layer.1} parent=31 // pred_check
        %p2085 = pneg %p100
      $region34: #{sine_layer.1} parent=31 // pred_check_branch
        %2087 = sbr.rel (%p2085) target = $region36
      $region35: #{sine_layer.1} parent=31 // pred_region
        %s2088 = smul.u32 16, %s14
      $region36: #{sine_layer.1} parent=31 // pred_fallthru
        _
    $region32: #{sine_layer.1} parent=5 // pred_fallthru
      _
    %p2089 = scmp.le.s32.totalorder 2, %s9
    // Predicated region
    $region37: #{sine_layer.1} parent=5 // pred_check
      %p2090 = pneg %p2089
    $region38: #{sine_layer.1} parent=5 // pred_check_branch
      %2092 = sbr.rel (%p2090) target = $region40
    $region39: #{sine_layer.1} parent=5 // pred_region
      %s2093 = ssub.s32 %s9, 2
      // Predicated region
      $region41: #{sine_layer.1} parent=39 // pred_check
        %p2094 = pneg %p106
      $region42: #{sine_layer.1} parent=39 // pred_check_branch
        %2096 = sbr.rel (%p2094) target = $region44
      $region43: #{sine_layer.1} parent=39 // pred_region
        %s2097 = smul.u32 16, %s15
        %p2098 = scmp.lt.s32.totalorder %s2097, 31
        %s2099 = scalar_select %p2098, %s2097, 31
        %s2100 = smul.addr %s2099, 8
        %s2101 = scalar_lea.vmem %s3, %s2100
      $region44: #{sine_layer.1} parent=39 // pred_fallthru
        _
    $region40: #{sine_layer.1} parent=5 // pred_fallthru
      _
  $region6: #{sine_layer.1} parent=0 // loop_footer
    %s13 = sadd.s32 1, %s9
  $region7: #{sine_layer.1} parent=0 // loop_footer_branch
    %8 = sbr.rel target = $region3
  $region8: #{sine_layer.1} parent=0 // loop_exit
    _

</llo_original>
